<compile_context>
chip_gen: v7x
topology: tpu7x:2x2x1
jax: 0.10.0
libtpu: 0.0.40
codegen_flags: <defaults>
</compile_context>

<pallas_src>
import jax
import jax.numpy as jnp
import numpy as np
from jax import lax
from jax.experimental import pallas as pl
from jax.experimental.pallas import tpu as pltpu


def _round_up(x, m):
    return ((x + m - 1) // m) * m


def _make_gru_kernel(*, t_chunk, Bp, Hp, T, has_tail, unroll):
    """Build the kernel for one grid step = `t_chunk` timesteps of the GRU recurrence.

    Refs:
      x_ref    : (t_chunk*Bp, I)   raw input slab, time-major (rows grouped per timestep)
      w_ih_ref : (I, 3*Hp)         fused input->hidden weights (gate slabs r|z|n)
      bx_ref   : (1, 3*Hp)         folded x-side biases (b_ir+b_hr | b_iz+b_hz | b_in)
      w_hh_ref : (Hp, 3*Hp)        fused hidden->hidden weights (gate slabs r|z|n)
      b_hn_ref : (1, Hp)           hidden bias of the n gate (cannot be pre-folded)
      w_fc_ref : (Hp, 128)         fc head weights, lane-padded (real column 0)
      b_fc_ref : (1, 128)          fc head bias, lane-padded
      out_ref  : (Bp, 128)         output (real data in [:, :1])
      gx_ref   : (t_chunk*Bp, 3Hp) VMEM scratch holding this chunk's x-side gate pre-acts
      h_ref    : (Bp, Hp)          hidden-state scratch, persists across grid steps
    """

    def kernel(x_ref, w_ih_ref, bx_ref, w_hh_ref, b_hn_ref, w_fc_ref, b_fc_ref,
               out_ref, gx_ref, h_ref):
        t_idx = pl.program_id(0)

        @pl.when(t_idx == 0)
        def _init():
            h_ref[...] = jnp.zeros_like(h_ref)

        # ---- chunk-level x-side projection (independent of h -> off the serial path) ----
        # One (t_chunk*Bp, I) x (I, 3Hp) matmul replaces the previous gates_x HBM stream.
        gx = jnp.dot(x_ref[...], w_ih_ref[...],
                     preferred_element_type=jnp.float32) + bx_ref[...]
        gx_ref[...] = gx

        # Resident weights; static lane-aligned slices so the r/z sigmoids can start
        # while the MXU is still producing the n slab.
        w_hh_rz = w_hh_ref[:, :2 * Hp]
        w_hh_n = w_hh_ref[:, 2 * Hp:]
        # TODO(synk): if the bundle dump shows W_hh re-pushed into MXU weight registers
        # every unrolled step, stage it once with pltpu.matmul_push_rhs / matmul_acc_lhs.
        b_hn_b = jnp.broadcast_to(b_hn_ref[...], (Bp, Hp))  # hoisted out of the loop

        t_base = t_idx * t_chunk

        def step(i, h):
            row = pl.multiple_of(i * Bp, Bp)
            g = gx_ref[pl.ds(row, Bp), :]                               # (Bp, 3Hp)
            gh_rz = jnp.dot(h, w_hh_rz, preferred_element_type=jnp.float32)
            gh_n = jnp.dot(h, w_hh_n, preferred_element_type=jnp.float32)
            # PyTorch GRU cell (gate order r, z, n):
            r = jax.nn.sigmoid(g[:, 0 * Hp:1 * Hp] + gh_rz[:, :Hp])
            z = jax.nn.sigmoid(g[:, 1 * Hp:2 * Hp] + gh_rz[:, Hp:])
            n = jnp.tanh(g[:, 2 * Hp:3 * Hp] + r * (gh_n + b_hn_b))
            h_new = (1.0 - z) * n + z * h
            if has_tail:
                # Padded tail timesteps: keep h frozen past t == T-1.
                h_new = jnp.where(t_base + i < T, h_new, h)
            return h_new

        h = lax.fori_loop(0, t_chunk, step, h_ref[...], unroll=unroll)
        h_ref[...] = h

        @pl.when(t_idx == pl.num_programs(0) - 1)
        def _finish():
            out_ref[...] = (jnp.dot(h, w_fc_ref[...],
                                    preferred_element_type=jnp.float32)
                            + b_fc_ref[...])

    return kernel


def gru_decoder_forward(x, params, *, t_chunk=None):
    """x: (B, T, input_size) float32 (batch_first, like the PyTorch module)."""
    w_ih, w_hh, b_ih, b_hh, w_fc, b_fc = params
    B, T, I = x.shape
    H = w_hh.shape[1]
    f32 = jnp.float32

    Hp = _round_up(H, 128)   # lane-aligned hidden width
    Bp = _round_up(B, 8)     # sublane-aligned batch

    # Chunk size: large enough to amortize ~0.35us per grid step, small enough that the
    # gx scratch + streamed-x double-buffer stay well inside VMEM (8 MiB budget for gx).
    if t_chunk is None:
        gx_budget = 8 * 1024 * 1024
        t_cap = max(1, gx_budget // (Bp * 3 * Hp * 4))
        t_chunk = int(max(1, min(128, T, t_cap)))
    Tp = _round_up(T, t_chunk)
    n_steps = Tp // t_chunk
    has_tail = (Tp != T)
    unroll = int(min(t_chunk, 8))   # partial unroll: LLO visibility w/o vreg blowup

    # ---- fuse + pad gate weights: each gate gets its own Hp-wide lane slab ----
    def pad_gate_cols(w):  # (3, rows, H) -> (rows, 3*Hp)
        rows = w.shape[1]
        out = jnp.zeros((rows, 3 * Hp), f32)
        for g in range(3):
            out = out.at[:, g * Hp:g * Hp + H].set(w[g])
        return out

    w_ih_cat = pad_gate_cols(w_ih)                                            # (I, 3Hp)
    w_hh_cat = jnp.zeros((Hp, 3 * Hp), f32).at[:H].set(pad_gate_cols(w_hh))   # (Hp, 3Hp)

    # Fold b_ir+b_hr, b_iz+b_hz (and b_in) into the x-side bias; b_hn stays separate
    # because of r * (W_hn h + b_hn).
    bias_x = jnp.zeros((1, 3 * Hp), f32)
    bias_x = bias_x.at[0, 0 * Hp:0 * Hp + H].set((b_ih[0] + b_hh[0])[0])
    bias_x = bias_x.at[0, 1 * Hp:1 * Hp + H].set((b_ih[1] + b_hh[1])[0])
    bias_x = bias_x.at[0, 2 * Hp:2 * Hp + H].set(b_ih[2][0])
    b_hn_p = jnp.zeros((1, Hp), f32).at[:, :H].set(b_hh[2])

    # fc head, lane-padded (real output lives in column 0).
    w_fc_p = jnp.zeros((Hp, 128), f32).at[:H, :1].set(w_fc)
    b_fc_p = jnp.zeros((1, 128), f32).at[:, :1].set(b_fc)

    # Raw input, time-major, padded, flattened to (Tp*Bp, I) so the kernel never reshapes.
    # Padded batch/time rows are zero -> their gates only carry bias_x; padded-time steps
    # are masked in-kernel, padded-batch rows never mix and are sliced off at the end.
    x_tm = jnp.zeros((Tp, Bp, I), f32).at[:T, :B].set(jnp.transpose(x, (1, 0, 2)))
    x2 = x_tm.reshape(Tp * Bp, I)

    kernel = _make_gru_kernel(t_chunk=t_chunk, Bp=Bp, Hp=Hp, T=T,
                              has_tail=has_tail, unroll=unroll)

    # Explicit VMEM budget (double-buffered inputs + scratches) so larger (t_chunk, H)
    # configurations don't get rejected by the default scoped limit (16/32 MiB).
    lane = lambda n: _round_up(n, 128)
    sub = lambda n: _round_up(n, 8)
    est = 4 * (
        2 * t_chunk * Bp * lane(I)                                   # x double buffer
        + 2 * (sub(I) * 3 * Hp + 8 * 3 * Hp + Hp * 3 * Hp
               + 8 * Hp + Hp * 128 + 8 * 128)                        # resident weights/biases
        + 2 * Bp * 128                                               # output
        + t_chunk * Bp * 3 * Hp + Bp * Hp)                           # gx + h scratch
    vmem_limit = int(max(32 * 1024 * 1024, min(120 * 1024 * 1024, 2 * est)))

    out = pl.pallas_call(
        kernel,
        out_shape=jax.ShapeDtypeStruct((Bp, 128), f32),
        grid_spec=pltpu.PrefetchScalarGridSpec(
            num_scalar_prefetch=0,
            grid=(n_steps,),
            in_specs=[
                pl.BlockSpec((t_chunk * Bp, I), lambda t: (t, 0)),   # streamed raw x
                pl.BlockSpec((I, 3 * Hp), lambda t: (0, 0)),         # resident weights
                pl.BlockSpec((1, 3 * Hp), lambda t: (0, 0)),
                pl.BlockSpec((Hp, 3 * Hp), lambda t: (0, 0)),
                pl.BlockSpec((1, Hp), lambda t: (0, 0)),
                pl.BlockSpec((Hp, 128), lambda t: (0, 0)),
                pl.BlockSpec((1, 128), lambda t: (0, 0)),
            ],
            out_specs=pl.BlockSpec((Bp, 128), lambda t: (0, 0)),
            scratch_shapes=[pltpu.VMEM((t_chunk * Bp, 3 * Hp), f32),  # gx chunk
                            pltpu.VMEM((Bp, Hp), f32)],               # carried hidden state
        ),
        compiler_params=pltpu.CompilerParams(
            dimension_semantics=("arbitrary",),        # the recurrence over T is serial
            vmem_limit_bytes=vmem_limit),
        # TODO(synk): on v7x, add a leading "parallel" batch-block grid axis (per-block h
        # scratch) so the two TensorCores each carry half the batch.
    )(x2, w_ih_cat, bias_x, w_hh_cat, b_hn_p, w_fc_p, b_fc_p)

    return out[:B, :1]


def init_params(key, input_size, hidden_size):
    """Deterministic init mimicking PyTorch's U(-1/sqrt(H), 1/sqrt(H))."""
    bound = 1.0 / np.sqrt(hidden_size)
    ks = jax.random.split(key, 6)
    u = lambda k, shape: jax.random.uniform(k, shape, jnp.float32, -bound, bound)
    w_ih = u(ks[0], (3, input_size, hidden_size))   # gate order (r, z, n)
    w_hh = u(ks[1], (3, hidden_size, hidden_size))
    b_ih = u(ks[2], (3, 1, hidden_size))
    b_hh = u(ks[3], (3, 1, hidden_size))
    w_fc = u(ks[4], (hidden_size, 1))
    b_fc = u(ks[5], (1, 1))
    return (w_ih, w_hh, b_ih, b_hh, w_fc, b_fc)


def gru_decoder_reference(x, params):
    """Pure-JAX reference implementing the exact PyTorch forward semantics."""
    w_ih, w_hh, b_ih, b_hh, w_fc, b_fc = params
    B, T, _ = x.shape
    H = w_hh.shape[1]
    hi = lax.Precision.HIGHEST
    h = jnp.zeros((B, H), jnp.float32)
    for t in range(T):
        x_t = x[:, t, :]
        r = jax.nn.sigmoid(jnp.dot(x_t, w_ih[0], precision=hi) + b_ih[0]
                           + jnp.dot(h, w_hh[0], precision=hi) + b_hh[0])
        z = jax.nn.sigmoid(jnp.dot(x_t, w_ih[1], precision=hi) + b_ih[1]
                           + jnp.dot(h, w_hh[1], precision=hi) + b_hh[1])
        n = jnp.tanh(jnp.dot(x_t, w_ih[2], precision=hi) + b_ih[2]
                     + r * (jnp.dot(h, w_hh[2], precision=hi) + b_hh[2]))
        h = (1.0 - z) * n + z * h
    return jnp.dot(h, w_fc, precision=hi) + b_fc


if __name__ == "__main__":
    B, T, INPUT_SIZE, HIDDEN_SIZE = 2, 8, 16, 32

    key = jax.random.PRNGKey(0)
    k_x, k_p = jax.random.split(key)
    x = jax.random.normal(k_x, (B, T, INPUT_SIZE), jnp.float32)
    params = init_params(k_p, INPUT_SIZE, HIDDEN_SIZE)

    ref = jax.block_until_ready(gru_decoder_reference(x, params))

    # Default chunking: one grid step covering all T timesteps.
    out = jax.block_until_ready(gru_decoder_forward(x, params))
    assert out.shape == (B, 1)
    np.testing.assert_allclose(np.asarray(out), np.asarray(ref), rtol=2e-3, atol=2e-3)

    # Non-dividing chunk (T=8, t_chunk=3): exercises the streamed multi-chunk recurrence,
    # the VMEM-carried hidden state, and the padded tail-timestep masking.
    out2 = jax.block_until_ready(gru_decoder_forward(x, params, t_chunk=3))
    np.testing.assert_allclose(np.asarray(out2), np.asarray(ref), rtol=2e-3, atol=2e-3)

    print("KERNEL_OK")
</pallas_src>

<mosaic_0001>
module attributes {stable_mosaic.version = 11 : i64} {
  func.func @kernel(%arg0: i32, %arg1: memref<64x16xf32, #tpu.memory_space<vmem>>, %arg2: memref<16x384xf32, #tpu.memory_space<vmem>>, %arg3: memref<1x384xf32, #tpu.memory_space<vmem>>, %arg4: memref<128x384xf32, #tpu.memory_space<vmem>>, %arg5: memref<1x128xf32, #tpu.memory_space<vmem>>, %arg6: memref<128x128xf32, #tpu.memory_space<vmem>>, %arg7: memref<1x128xf32, #tpu.memory_space<vmem>>, %arg8: memref<8x128xf32, #tpu.memory_space<vmem>>, %arg9: memref<64x384xf32, #tpu.memory_space<vmem>>, %arg10: memref<8x128xf32, #tpu.memory_space<vmem>>) attributes {dimension_semantics = [#tpu.dimension_semantics<arbitrary>], iteration_bounds = array<i64: 1>, scalar_prefetch = 0 : i64, scratch_operands = 2 : i64, tpu.core_type = #tpu.core_type<tc>, window_params = [{transform_indices = @transform_0, window_bounds = array<i64: 64, 16>}, {pipeline_mode = #tpu.pipeline_mode<synchronous>, transform_indices = @transform_1, window_bounds = array<i64: 16, 384>}, {pipeline_mode = #tpu.pipeline_mode<synchronous>, transform_indices = @transform_2, window_bounds = array<i64: 1, 384>}, {pipeline_mode = #tpu.pipeline_mode<synchronous>, transform_indices = @transform_3, window_bounds = array<i64: 128, 384>}, {pipeline_mode = #tpu.pipeline_mode<synchronous>, transform_indices = @transform_4, window_bounds = array<i64: 1, 128>}, {pipeline_mode = #tpu.pipeline_mode<synchronous>, transform_indices = @transform_5, window_bounds = array<i64: 128, 128>}, {pipeline_mode = #tpu.pipeline_mode<synchronous>, transform_indices = @transform_6, window_bounds = array<i64: 1, 128>}, {pipeline_mode = #tpu.pipeline_mode<synchronous>, transform_indices = @transform_7, window_bounds = array<i64: 8, 128>}]} {
    %c0_i32 = arith.constant 0 : i32
    %0 = arith.cmpi eq, %arg0, %c0_i32 : i32
    %1 = arith.extui %0 : i1 to i32
    %c0_i32_0 = arith.constant 0 : i32
    %2 = arith.cmpi ne, %1, %c0_i32_0 : i32
    scf.if %2 {
      %cst_76 = arith.constant 0.000000e+00 : f32
      %276 = vector.broadcast %cst_76 : f32 to vector<8x128xf32>
      %c0_77 = arith.constant 0 : index
      %c0_78 = arith.constant 0 : index
      %277 = vector.load %arg10[%c0_77, %c0_78] : memref<8x128xf32, #tpu.memory_space<vmem>>, vector<8x128xf32>
      tpu.vector_store %arg10[%c0_77, %c0_78], %276 {strides = array<i32>} : memref<8x128xf32, #tpu.memory_space<vmem>>, vector<8x128xf32>,
    } else {
    }
    %c0 = arith.constant 0 : index
    %c0_1 = arith.constant 0 : index
    %3 = vector.load %arg1[%c0, %c0_1] : memref<64x16xf32, #tpu.memory_space<vmem>>, vector<64x16xf32>
    %c0_2 = arith.constant 0 : index
    %c0_3 = arith.constant 0 : index
    %4 = vector.load %arg2[%c0_2, %c0_3] : memref<16x384xf32, #tpu.memory_space<vmem>>, vector<16x384xf32>
    %cst = arith.constant dense<0.000000e+00> : vector<64x384xf32>
    %5 = tpu.matmul %3, %4, %cst {dimension_numbers = #tpu.dot_dimension_numbers<[1], [0], [0], [1], [0, 0, 1, 1], [], []>} : vector<64x16xf32>, vector<16x384xf32>, vector<64x384xf32> -> vector<64x384xf32>
    %c0_4 = arith.constant 0 : index
    %c0_5 = arith.constant 0 : index
    %6 = vector.load %arg3[%c0_4, %c0_5] : memref<1x384xf32, #tpu.memory_space<vmem>>, vector<1x384xf32>
    %7 = vector.broadcast %6 : vector<1x384xf32> to vector<64x384xf32>
    %8 = arith.addf %5, %7 : vector<64x384xf32>
    %c0_6 = arith.constant 0 : index
    %c0_7 = arith.constant 0 : index
    %9 = vector.load %arg9[%c0_6, %c0_7] : memref<64x384xf32, #tpu.memory_space<vmem>>, vector<64x384xf32>
    tpu.vector_store %arg9[%c0_6, %c0_7], %8 {strides = array<i32>} : memref<64x384xf32, #tpu.memory_space<vmem>>, vector<64x384xf32>,
    %c0_8 = arith.constant 0 : index
    %c0_9 = arith.constant 0 : index
    %10 = vector.load %arg4[%c0_8, %c0_9] : memref<128x384xf32, #tpu.memory_space<vmem>>, vector<128x256xf32>
    %c0_10 = arith.constant 0 : index
    %c256 = arith.constant 256 : index
    %11 = vector.load %arg4[%c0_10, %c256] : memref<128x384xf32, #tpu.memory_space<vmem>>, vector<128x128xf32>
    %c0_11 = arith.constant 0 : index
    %c0_12 = arith.constant 0 : index
    %12 = vector.load %arg5[%c0_11, %c0_12] : memref<1x128xf32, #tpu.memory_space<vmem>>, vector<1x128xf32>
    %13 = vector.shape_cast %12 : vector<1x128xf32> to vector<1x128xf32>
    %14 = vector.broadcast %13 : vector<1x128xf32> to vector<8x128xf32>
    %c0_13 = arith.constant 0 : index
    %c0_14 = arith.constant 0 : index
    %15 = vector.load %arg10[%c0_13, %c0_14] : memref<8x128xf32, #tpu.memory_space<vmem>>, vector<8x128xf32>
    %c0_i32_15 = arith.constant 0 : i32
    %c8_i32 = arith.constant 8 : i32
    %16 = arith.muli %c0_i32_15, %c8_i32 : i32
    %17 = tpu.assume_multiple %16, 8 : i32
    %18 = arith.index_cast %17 : i32 to index
    %c0_16 = arith.constant 0 : index
    %19 = vector.load %arg9[%18, %c0_16] : memref<64x384xf32, #tpu.memory_space<vmem>>, vector<8x384xf32>
    %cst_17 = arith.constant dense<0.000000e+00> : vector<8x256xf32>
    %20 = tpu.matmul %15, %10, %cst_17 {dimension_numbers = #tpu.dot_dimension_numbers<[1], [0], [0], [1], [0, 0, 1, 1], [], []>} : vector<8x128xf32>, vector<128x256xf32>, vector<8x256xf32> -> vector<8x256xf32>
    %cst_18 = arith.constant dense<0.000000e+00> : vector<8x128xf32>
    %21 = tpu.matmul %15, %11, %cst_18 {dimension_numbers = #tpu.dot_dimension_numbers<[1], [0], [0], [1], [0, 0, 1, 1], [], []>} : vector<8x128xf32>, vector<128x128xf32>, vector<8x128xf32> -> vector<8x128xf32>
    %22 = vector.extract_strided_slice %19 {offsets = [0, 0], sizes = [8, 128], strides = [1, 1]} : vector<8x384xf32> to vector<8x128xf32>
    %23 = vector.extract_strided_slice %20 {offsets = [0, 0], sizes = [8, 128], strides = [1, 1]} : vector<8x256xf32> to vector<8x128xf32>
    %24 = arith.addf %22, %23 : vector<8x128xf32>
    %25 = arith.negf %24 : vector<8x128xf32>
    %26 = math.exp %25 : vector<8x128xf32>
    %cst_19 = arith.constant 1.000000e+00 : f32
    %27 = vector.broadcast %cst_19 : f32 to vector<8x128xf32>
    %28 = arith.addf %27, %26 : vector<8x128xf32>
    %29 = arith.divf %27, %28 : vector<8x128xf32>
    %30 = vector.extract_strided_slice %19 {offsets = [0, 128], sizes = [8, 128], strides = [1, 1]} : vector<8x384xf32> to vector<8x128xf32>
    %31 = vector.extract_strided_slice %20 {offsets = [0, 128], sizes = [8, 128], strides = [1, 1]} : vector<8x256xf32> to vector<8x128xf32>
    %32 = arith.addf %30, %31 : vector<8x128xf32>
    %33 = arith.negf %32 : vector<8x128xf32>
    %34 = math.exp %33 : vector<8x128xf32>
    %cst_20 = arith.constant 1.000000e+00 : f32
    %35 = vector.broadcast %cst_20 : f32 to vector<8x128xf32>
    %36 = arith.addf %35, %34 : vector<8x128xf32>
    %37 = arith.divf %35, %36 : vector<8x128xf32>
    %38 = vector.extract_strided_slice %19 {offsets = [0, 256], sizes = [8, 128], strides = [1, 1]} : vector<8x384xf32> to vector<8x128xf32>
    %39 = arith.addf %21, %14 : vector<8x128xf32>
    %40 = arith.mulf %29, %39 : vector<8x128xf32>
    %41 = arith.addf %38, %40 : vector<8x128xf32>
    %42 = math.tanh %41 : vector<8x128xf32>
    %cst_21 = arith.constant 1.000000e+00 : f32
    %43 = vector.broadcast %cst_21 : f32 to vector<8x128xf32>
    %44 = arith.subf %43, %37 : vector<8x128xf32>
    %45 = arith.mulf %44, %42 : vector<8x128xf32>
    %46 = arith.mulf %37, %15 : vector<8x128xf32>
    %47 = arith.addf %45, %46 : vector<8x128xf32>
    %c1_i32 = arith.constant 1 : i32
    %c8_i32_22 = arith.constant 8 : i32
    %48 = arith.muli %c1_i32, %c8_i32_22 : i32
    %49 = tpu.assume_multiple %48, 8 : i32
    %50 = arith.index_cast %49 : i32 to index
    %c0_23 = arith.constant 0 : index
    %51 = vector.load %arg9[%50, %c0_23] : memref<64x384xf32, #tpu.memory_space<vmem>>, vector<8x384xf32>
    %cst_24 = arith.constant dense<0.000000e+00> : vector<8x256xf32>
    %52 = tpu.matmul %47, %10, %cst_24 {dimension_numbers = #tpu.dot_dimension_numbers<[1], [0], [0], [1], [0, 0, 1, 1], [], []>} : vector<8x128xf32>, vector<128x256xf32>, vector<8x256xf32> -> vector<8x256xf32>
    %cst_25 = arith.constant dense<0.000000e+00> : vector<8x128xf32>
    %53 = tpu.matmul %47, %11, %cst_25 {dimension_numbers = #tpu.dot_dimension_numbers<[1], [0], [0], [1], [0, 0, 1, 1], [], []>} : vector<8x128xf32>, vector<128x128xf32>, vector<8x128xf32> -> vector<8x128xf32>
    %54 = vector.extract_strided_slice %51 {offsets = [0, 0], sizes = [8, 128], strides = [1, 1]} : vector<8x384xf32> to vector<8x128xf32>
    %55 = vector.extract_strided_slice %52 {offsets = [0, 0], sizes = [8, 128], strides = [1, 1]} : vector<8x256xf32> to vector<8x128xf32>
    %56 = arith.addf %54, %55 : vector<8x128xf32>
    %57 = arith.negf %56 : vector<8x128xf32>
    %58 = math.exp %57 : vector<8x128xf32>
    %cst_26 = arith.constant 1.000000e+00 : f32
    %59 = vector.broadcast %cst_26 : f32 to vector<8x128xf32>
    %60 = arith.addf %59, %58 : vector<8x128xf32>
    %61 = arith.divf %59, %60 : vector<8x128xf32>
    %62 = vector.extract_strided_slice %51 {offsets = [0, 128], sizes = [8, 128], strides = [1, 1]} : vector<8x384xf32> to vector<8x128xf32>
    %63 = vector.extract_strided_slice %52 {offsets = [0, 128], sizes = [8, 128], strides = [1, 1]} : vector<8x256xf32> to vector<8x128xf32>
    %64 = arith.addf %62, %63 : vector<8x128xf32>
    %65 = arith.negf %64 : vector<8x128xf32>
    %66 = math.exp %65 : vector<8x128xf32>
    %cst_27 = arith.constant 1.000000e+00 : f32
    %67 = vector.broadcast %cst_27 : f32 to vector<8x128xf32>
    %68 = arith.addf %67, %66 : vector<8x128xf32>
    %69 = arith.divf %67, %68 : vector<8x128xf32>
    %70 = vector.extract_strided_slice %51 {offsets = [0, 256], sizes = [8, 128], strides = [1, 1]} : vector<8x384xf32> to vector<8x128xf32>
    %71 = arith.addf %53, %14 : vector<8x128xf32>
    %72 = arith.mulf %61, %71 : vector<8x128xf32>
    %73 = arith.addf %70, %72 : vector<8x128xf32>
    %74 = math.tanh %73 : vector<8x128xf32>
    %cst_28 = arith.constant 1.000000e+00 : f32
    %75 = vector.broadcast %cst_28 : f32 to vector<8x128xf32>
    %76 = arith.subf %75, %69 : vector<8x128xf32>
    %77 = arith.mulf %76, %74 : vector<8x128xf32>
    %78 = arith.mulf %69, %47 : vector<8x128xf32>
    %79 = arith.addf %77, %78 : vector<8x128xf32>
    %c2_i32 = arith.constant 2 : i32
    %c8_i32_29 = arith.constant 8 : i32
    %80 = arith.muli %c2_i32, %c8_i32_29 : i32
    %81 = tpu.assume_multiple %80, 8 : i32
    %82 = arith.index_cast %81 : i32 to index
    %c0_30 = arith.constant 0 : index
    %83 = vector.load %arg9[%82, %c0_30] : memref<64x384xf32, #tpu.memory_space<vmem>>, vector<8x384xf32>
    %cst_31 = arith.constant dense<0.000000e+00> : vector<8x256xf32>
    %84 = tpu.matmul %79, %10, %cst_31 {dimension_numbers = #tpu.dot_dimension_numbers<[1], [0], [0], [1], [0, 0, 1, 1], [], []>} : vector<8x128xf32>, vector<128x256xf32>, vector<8x256xf32> -> vector<8x256xf32>
    %cst_32 = arith.constant dense<0.000000e+00> : vector<8x128xf32>
    %85 = tpu.matmul %79, %11, %cst_32 {dimension_numbers = #tpu.dot_dimension_numbers<[1], [0], [0], [1], [0, 0, 1, 1], [], []>} : vector<8x128xf32>, vector<128x128xf32>, vector<8x128xf32> -> vector<8x128xf32>
    %86 = vector.extract_strided_slice %83 {offsets = [0, 0], sizes = [8, 128], strides = [1, 1]} : vector<8x384xf32> to vector<8x128xf32>
    %87 = vector.extract_strided_slice %84 {offsets = [0, 0], sizes = [8, 128], strides = [1, 1]} : vector<8x256xf32> to vector<8x128xf32>
    %88 = arith.addf %86, %87 : vector<8x128xf32>
    %89 = arith.negf %88 : vector<8x128xf32>
    %90 = math.exp %89 : vector<8x128xf32>
    %cst_33 = arith.constant 1.000000e+00 : f32
    %91 = vector.broadcast %cst_33 : f32 to vector<8x128xf32>
    %92 = arith.addf %91, %90 : vector<8x128xf32>
    %93 = arith.divf %91, %92 : vector<8x128xf32>
    %94 = vector.extract_strided_slice %83 {offsets = [0, 128], sizes = [8, 128], strides = [1, 1]} : vector<8x384xf32> to vector<8x128xf32>
    %95 = vector.extract_strided_slice %84 {offsets = [0, 128], sizes = [8, 128], strides = [1, 1]} : vector<8x256xf32> to vector<8x128xf32>
    %96 = arith.addf %94, %95 : vector<8x128xf32>
    %97 = arith.negf %96 : vector<8x128xf32>
    %98 = math.exp %97 : vector<8x128xf32>
    %cst_34 = arith.constant 1.000000e+00 : f32
    %99 = vector.broadcast %cst_34 : f32 to vector<8x128xf32>
    %100 = arith.addf %99, %98 : vector<8x128xf32>
    %101 = arith.divf %99, %100 : vector<8x128xf32>
    %102 = vector.extract_strided_slice %83 {offsets = [0, 256], sizes = [8, 128], strides = [1, 1]} : vector<8x384xf32> to vector<8x128xf32>
    %103 = arith.addf %85, %14 : vector<8x128xf32>
    %104 = arith.mulf %93, %103 : vector<8x128xf32>
    %105 = arith.addf %102, %104 : vector<8x128xf32>
    %106 = math.tanh %105 : vector<8x128xf32>
    %cst_35 = arith.constant 1.000000e+00 : f32
    %107 = vector.broadcast %cst_35 : f32 to vector<8x128xf32>
    %108 = arith.subf %107, %101 : vector<8x128xf32>
    %109 = arith.mulf %108, %106 : vector<8x128xf32>
    %110 = arith.mulf %101, %79 : vector<8x128xf32>
    %111 = arith.addf %109, %110 : vector<8x128xf32>
    %c3_i32 = arith.constant 3 : i32
    %c8_i32_36 = arith.constant 8 : i32
    %112 = arith.muli %c3_i32, %c8_i32_36 : i32
    %113 = tpu.assume_multiple %112, 8 : i32
    %114 = arith.index_cast %113 : i32 to index
    %c0_37 = arith.constant 0 : index
    %115 = vector.load %arg9[%114, %c0_37] : memref<64x384xf32, #tpu.memory_space<vmem>>, vector<8x384xf32>
    %cst_38 = arith.constant dense<0.000000e+00> : vector<8x256xf32>
    %116 = tpu.matmul %111, %10, %cst_38 {dimension_numbers = #tpu.dot_dimension_numbers<[1], [0], [0], [1], [0, 0, 1, 1], [], []>} : vector<8x128xf32>, vector<128x256xf32>, vector<8x256xf32> -> vector<8x256xf32>
    %cst_39 = arith.constant dense<0.000000e+00> : vector<8x128xf32>
    %117 = tpu.matmul %111, %11, %cst_39 {dimension_numbers = #tpu.dot_dimension_numbers<[1], [0], [0], [1], [0, 0, 1, 1], [], []>} : vector<8x128xf32>, vector<128x128xf32>, vector<8x128xf32> -> vector<8x128xf32>
    %118 = vector.extract_strided_slice %115 {offsets = [0, 0], sizes = [8, 128], strides = [1, 1]} : vector<8x384xf32> to vector<8x128xf32>
    %119 = vector.extract_strided_slice %116 {offsets = [0, 0], sizes = [8, 128], strides = [1, 1]} : vector<8x256xf32> to vector<8x128xf32>
    %120 = arith.addf %118, %119 : vector<8x128xf32>
    %121 = arith.negf %120 : vector<8x128xf32>
    %122 = math.exp %121 : vector<8x128xf32>
    %cst_40 = arith.constant 1.000000e+00 : f32
    %123 = vector.broadcast %cst_40 : f32 to vector<8x128xf32>
    %124 = arith.addf %123, %122 : vector<8x128xf32>
    %125 = arith.divf %123, %124 : vector<8x128xf32>
    %126 = vector.extract_strided_slice %115 {offsets = [0, 128], sizes = [8, 128], strides = [1, 1]} : vector<8x384xf32> to vector<8x128xf32>
    %127 = vector.extract_strided_slice %116 {offsets = [0, 128], sizes = [8, 128], strides = [1, 1]} : vector<8x256xf32> to vector<8x128xf32>
    %128 = arith.addf %126, %127 : vector<8x128xf32>
    %129 = arith.negf %128 : vector<8x128xf32>
    %130 = math.exp %129 : vector<8x128xf32>
    %cst_41 = arith.constant 1.000000e+00 : f32
    %131 = vector.broadcast %cst_41 : f32 to vector<8x128xf32>
    %132 = arith.addf %131, %130 : vector<8x128xf32>
    %133 = arith.divf %131, %132 : vector<8x128xf32>
    %134 = vector.extract_strided_slice %115 {offsets = [0, 256], sizes = [8, 128], strides = [1, 1]} : vector<8x384xf32> to vector<8x128xf32>
    %135 = arith.addf %117, %14 : vector<8x128xf32>
    %136 = arith.mulf %125, %135 : vector<8x128xf32>
    %137 = arith.addf %134, %136 : vector<8x128xf32>
    %138 = math.tanh %137 : vector<8x128xf32>
    %cst_42 = arith.constant 1.000000e+00 : f32
    %139 = vector.broadcast %cst_42 : f32 to vector<8x128xf32>
    %140 = arith.subf %139, %133 : vector<8x128xf32>
    %141 = arith.mulf %140, %138 : vector<8x128xf32>
    %142 = arith.mulf %133, %111 : vector<8x128xf32>
    %143 = arith.addf %141, %142 : vector<8x128xf32>
    %c4_i32 = arith.constant 4 : i32
    %c8_i32_43 = arith.constant 8 : i32
    %144 = arith.muli %c4_i32, %c8_i32_43 : i32
    %145 = tpu.assume_multiple %144, 8 : i32
    %146 = arith.index_cast %145 : i32 to index
    %c0_44 = arith.constant 0 : index
    %147 = vector.load %arg9[%146, %c0_44] : memref<64x384xf32, #tpu.memory_space<vmem>>, vector<8x384xf32>
    %cst_45 = arith.constant dense<0.000000e+00> : vector<8x256xf32>
    %148 = tpu.matmul %143, %10, %cst_45 {dimension_numbers = #tpu.dot_dimension_numbers<[1], [0], [0], [1], [0, 0, 1, 1], [], []>} : vector<8x128xf32>, vector<128x256xf32>, vector<8x256xf32> -> vector<8x256xf32>
    %cst_46 = arith.constant dense<0.000000e+00> : vector<8x128xf32>
    %149 = tpu.matmul %143, %11, %cst_46 {dimension_numbers = #tpu.dot_dimension_numbers<[1], [0], [0], [1], [0, 0, 1, 1], [], []>} : vector<8x128xf32>, vector<128x128xf32>, vector<8x128xf32> -> vector<8x128xf32>
    %150 = vector.extract_strided_slice %147 {offsets = [0, 0], sizes = [8, 128], strides = [1, 1]} : vector<8x384xf32> to vector<8x128xf32>
    %151 = vector.extract_strided_slice %148 {offsets = [0, 0], sizes = [8, 128], strides = [1, 1]} : vector<8x256xf32> to vector<8x128xf32>
    %152 = arith.addf %150, %151 : vector<8x128xf32>
    %153 = arith.negf %152 : vector<8x128xf32>
    %154 = math.exp %153 : vector<8x128xf32>
    %cst_47 = arith.constant 1.000000e+00 : f32
    %155 = vector.broadcast %cst_47 : f32 to vector<8x128xf32>
    %156 = arith.addf %155, %154 : vector<8x128xf32>
    %157 = arith.divf %155, %156 : vector<8x128xf32>
    %158 = vector.extract_strided_slice %147 {offsets = [0, 128], sizes = [8, 128], strides = [1, 1]} : vector<8x384xf32> to vector<8x128xf32>
    %159 = vector.extract_strided_slice %148 {offsets = [0, 128], sizes = [8, 128], strides = [1, 1]} : vector<8x256xf32> to vector<8x128xf32>
    %160 = arith.addf %158, %159 : vector<8x128xf32>
    %161 = arith.negf %160 : vector<8x128xf32>
    %162 = math.exp %161 : vector<8x128xf32>
    %cst_48 = arith.constant 1.000000e+00 : f32
    %163 = vector.broadcast %cst_48 : f32 to vector<8x128xf32>
    %164 = arith.addf %163, %162 : vector<8x128xf32>
    %165 = arith.divf %163, %164 : vector<8x128xf32>
    %166 = vector.extract_strided_slice %147 {offsets = [0, 256], sizes = [8, 128], strides = [1, 1]} : vector<8x384xf32> to vector<8x128xf32>
    %167 = arith.addf %149, %14 : vector<8x128xf32>
    %168 = arith.mulf %157, %167 : vector<8x128xf32>
    %169 = arith.addf %166, %168 : vector<8x128xf32>
    %170 = math.tanh %169 : vector<8x128xf32>
    %cst_49 = arith.constant 1.000000e+00 : f32
    %171 = vector.broadcast %cst_49 : f32 to vector<8x128xf32>
    %172 = arith.subf %171, %165 : vector<8x128xf32>
    %173 = arith.mulf %172, %170 : vector<8x128xf32>
    %174 = arith.mulf %165, %143 : vector<8x128xf32>
    %175 = arith.addf %173, %174 : vector<8x128xf32>
    %c5_i32 = arith.constant 5 : i32
    %c8_i32_50 = arith.constant 8 : i32
    %176 = arith.muli %c5_i32, %c8_i32_50 : i32
    %177 = tpu.assume_multiple %176, 8 : i32
    %178 = arith.index_cast %177 : i32 to index
    %c0_51 = arith.constant 0 : index
    %179 = vector.load %arg9[%178, %c0_51] : memref<64x384xf32, #tpu.memory_space<vmem>>, vector<8x384xf32>
    %cst_52 = arith.constant dense<0.000000e+00> : vector<8x256xf32>
    %180 = tpu.matmul %175, %10, %cst_52 {dimension_numbers = #tpu.dot_dimension_numbers<[1], [0], [0], [1], [0, 0, 1, 1], [], []>} : vector<8x128xf32>, vector<128x256xf32>, vector<8x256xf32> -> vector<8x256xf32>
    %cst_53 = arith.constant dense<0.000000e+00> : vector<8x128xf32>
    %181 = tpu.matmul %175, %11, %cst_53 {dimension_numbers = #tpu.dot_dimension_numbers<[1], [0], [0], [1], [0, 0, 1, 1], [], []>} : vector<8x128xf32>, vector<128x128xf32>, vector<8x128xf32> -> vector<8x128xf32>
    %182 = vector.extract_strided_slice %179 {offsets = [0, 0], sizes = [8, 128], strides = [1, 1]} : vector<8x384xf32> to vector<8x128xf32>
    %183 = vector.extract_strided_slice %180 {offsets = [0, 0], sizes = [8, 128], strides = [1, 1]} : vector<8x256xf32> to vector<8x128xf32>
    %184 = arith.addf %182, %183 : vector<8x128xf32>
    %185 = arith.negf %184 : vector<8x128xf32>
    %186 = math.exp %185 : vector<8x128xf32>
    %cst_54 = arith.constant 1.000000e+00 : f32
    %187 = vector.broadcast %cst_54 : f32 to vector<8x128xf32>
    %188 = arith.addf %187, %186 : vector<8x128xf32>
    %189 = arith.divf %187, %188 : vector<8x128xf32>
    %190 = vector.extract_strided_slice %179 {offsets = [0, 128], sizes = [8, 128], strides = [1, 1]} : vector<8x384xf32> to vector<8x128xf32>
    %191 = vector.extract_strided_slice %180 {offsets = [0, 128], sizes = [8, 128], strides = [1, 1]} : vector<8x256xf32> to vector<8x128xf32>
    %192 = arith.addf %190, %191 : vector<8x128xf32>
    %193 = arith.negf %192 : vector<8x128xf32>
    %194 = math.exp %193 : vector<8x128xf32>
    %cst_55 = arith.constant 1.000000e+00 : f32
    %195 = vector.broadcast %cst_55 : f32 to vector<8x128xf32>
    %196 = arith.addf %195, %194 : vector<8x128xf32>
    %197 = arith.divf %195, %196 : vector<8x128xf32>
    %198 = vector.extract_strided_slice %179 {offsets = [0, 256], sizes = [8, 128], strides = [1, 1]} : vector<8x384xf32> to vector<8x128xf32>
    %199 = arith.addf %181, %14 : vector<8x128xf32>
    %200 = arith.mulf %189, %199 : vector<8x128xf32>
    %201 = arith.addf %198, %200 : vector<8x128xf32>
    %202 = math.tanh %201 : vector<8x128xf32>
    %cst_56 = arith.constant 1.000000e+00 : f32
    %203 = vector.broadcast %cst_56 : f32 to vector<8x128xf32>
    %204 = arith.subf %203, %197 : vector<8x128xf32>
    %205 = arith.mulf %204, %202 : vector<8x128xf32>
    %206 = arith.mulf %197, %175 : vector<8x128xf32>
    %207 = arith.addf %205, %206 : vector<8x128xf32>
    %c6_i32 = arith.constant 6 : i32
    %c8_i32_57 = arith.constant 8 : i32
    %208 = arith.muli %c6_i32, %c8_i32_57 : i32
    %209 = tpu.assume_multiple %208, 8 : i32
    %210 = arith.index_cast %209 : i32 to index
    %c0_58 = arith.constant 0 : index
    %211 = vector.load %arg9[%210, %c0_58] : memref<64x384xf32, #tpu.memory_space<vmem>>, vector<8x384xf32>
    %cst_59 = arith.constant dense<0.000000e+00> : vector<8x256xf32>
    %212 = tpu.matmul %207, %10, %cst_59 {dimension_numbers = #tpu.dot_dimension_numbers<[1], [0], [0], [1], [0, 0, 1, 1], [], []>} : vector<8x128xf32>, vector<128x256xf32>, vector<8x256xf32> -> vector<8x256xf32>
    %cst_60 = arith.constant dense<0.000000e+00> : vector<8x128xf32>
    %213 = tpu.matmul %207, %11, %cst_60 {dimension_numbers = #tpu.dot_dimension_numbers<[1], [0], [0], [1], [0, 0, 1, 1], [], []>} : vector<8x128xf32>, vector<128x128xf32>, vector<8x128xf32> -> vector<8x128xf32>
    %214 = vector.extract_strided_slice %211 {offsets = [0, 0], sizes = [8, 128], strides = [1, 1]} : vector<8x384xf32> to vector<8x128xf32>
    %215 = vector.extract_strided_slice %212 {offsets = [0, 0], sizes = [8, 128], strides = [1, 1]} : vector<8x256xf32> to vector<8x128xf32>
    %216 = arith.addf %214, %215 : vector<8x128xf32>
    %217 = arith.negf %216 : vector<8x128xf32>
    %218 = math.exp %217 : vector<8x128xf32>
    %cst_61 = arith.constant 1.000000e+00 : f32
    %219 = vector.broadcast %cst_61 : f32 to vector<8x128xf32>
    %220 = arith.addf %219, %218 : vector<8x128xf32>
    %221 = arith.divf %219, %220 : vector<8x128xf32>
    %222 = vector.extract_strided_slice %211 {offsets = [0, 128], sizes = [8, 128], strides = [1, 1]} : vector<8x384xf32> to vector<8x128xf32>
    %223 = vector.extract_strided_slice %212 {offsets = [0, 128], sizes = [8, 128], strides = [1, 1]} : vector<8x256xf32> to vector<8x128xf32>
    %224 = arith.addf %222, %223 : vector<8x128xf32>
    %225 = arith.negf %224 : vector<8x128xf32>
    %226 = math.exp %225 : vector<8x128xf32>
    %cst_62 = arith.constant 1.000000e+00 : f32
    %227 = vector.broadcast %cst_62 : f32 to vector<8x128xf32>
    %228 = arith.addf %227, %226 : vector<8x128xf32>
    %229 = arith.divf %227, %228 : vector<8x128xf32>
    %230 = vector.extract_strided_slice %211 {offsets = [0, 256], sizes = [8, 128], strides = [1, 1]} : vector<8x384xf32> to vector<8x128xf32>
    %231 = arith.addf %213, %14 : vector<8x128xf32>
    %232 = arith.mulf %221, %231 : vector<8x128xf32>
    %233 = arith.addf %230, %232 : vector<8x128xf32>
    %234 = math.tanh %233 : vector<8x128xf32>
    %cst_63 = arith.constant 1.000000e+00 : f32
    %235 = vector.broadcast %cst_63 : f32 to vector<8x128xf32>
    %236 = arith.subf %235, %229 : vector<8x128xf32>
    %237 = arith.mulf %236, %234 : vector<8x128xf32>
    %238 = arith.mulf %229, %207 : vector<8x128xf32>
    %239 = arith.addf %237, %238 : vector<8x128xf32>
    %c7_i32 = arith.constant 7 : i32
    %c8_i32_64 = arith.constant 8 : i32
    %240 = arith.muli %c7_i32, %c8_i32_64 : i32
    %241 = tpu.assume_multiple %240, 8 : i32
    %242 = arith.index_cast %241 : i32 to index
    %c0_65 = arith.constant 0 : index
    %243 = vector.load %arg9[%242, %c0_65] : memref<64x384xf32, #tpu.memory_space<vmem>>, vector<8x384xf32>
    %cst_66 = arith.constant dense<0.000000e+00> : vector<8x256xf32>
    %244 = tpu.matmul %239, %10, %cst_66 {dimension_numbers = #tpu.dot_dimension_numbers<[1], [0], [0], [1], [0, 0, 1, 1], [], []>} : vector<8x128xf32>, vector<128x256xf32>, vector<8x256xf32> -> vector<8x256xf32>
    %cst_67 = arith.constant dense<0.000000e+00> : vector<8x128xf32>
    %245 = tpu.matmul %239, %11, %cst_67 {dimension_numbers = #tpu.dot_dimension_numbers<[1], [0], [0], [1], [0, 0, 1, 1], [], []>} : vector<8x128xf32>, vector<128x128xf32>, vector<8x128xf32> -> vector<8x128xf32>
    %246 = vector.extract_strided_slice %243 {offsets = [0, 0], sizes = [8, 128], strides = [1, 1]} : vector<8x384xf32> to vector<8x128xf32>
    %247 = vector.extract_strided_slice %244 {offsets = [0, 0], sizes = [8, 128], strides = [1, 1]} : vector<8x256xf32> to vector<8x128xf32>
    %248 = arith.addf %246, %247 : vector<8x128xf32>
    %249 = arith.negf %248 : vector<8x128xf32>
    %250 = math.exp %249 : vector<8x128xf32>
    %cst_68 = arith.constant 1.000000e+00 : f32
    %251 = vector.broadcast %cst_68 : f32 to vector<8x128xf32>
    %252 = arith.addf %251, %250 : vector<8x128xf32>
    %253 = arith.divf %251, %252 : vector<8x128xf32>
    %254 = vector.extract_strided_slice %243 {offsets = [0, 128], sizes = [8, 128], strides = [1, 1]} : vector<8x384xf32> to vector<8x128xf32>
    %255 = vector.extract_strided_slice %244 {offsets = [0, 128], sizes = [8, 128], strides = [1, 1]} : vector<8x256xf32> to vector<8x128xf32>
    %256 = arith.addf %254, %255 : vector<8x128xf32>
    %257 = arith.negf %256 : vector<8x128xf32>
    %258 = math.exp %257 : vector<8x128xf32>
    %cst_69 = arith.constant 1.000000e+00 : f32
    %259 = vector.broadcast %cst_69 : f32 to vector<8x128xf32>
    %260 = arith.addf %259, %258 : vector<8x128xf32>
    %261 = arith.divf %259, %260 : vector<8x128xf32>
    %262 = vector.extract_strided_slice %243 {offsets = [0, 256], sizes = [8, 128], strides = [1, 1]} : vector<8x384xf32> to vector<8x128xf32>
    %263 = arith.addf %245, %14 : vector<8x128xf32>
    %264 = arith.mulf %253, %263 : vector<8x128xf32>
    %265 = arith.addf %262, %264 : vector<8x128xf32>
    %266 = math.tanh %265 : vector<8x128xf32>
    %cst_70 = arith.constant 1.000000e+00 : f32
    %267 = vector.broadcast %cst_70 : f32 to vector<8x128xf32>
    %268 = arith.subf %267, %261 : vector<8x128xf32>
    %269 = arith.mulf %268, %266 : vector<8x128xf32>
    %270 = arith.mulf %261, %239 : vector<8x128xf32>
    %271 = arith.addf %269, %270 : vector<8x128xf32>
    %c8_i32_71 = arith.constant 8 : i32
    %c0_72 = arith.constant 0 : index
    %c0_73 = arith.constant 0 : index
    %272 = vector.load %arg10[%c0_72, %c0_73] : memref<8x128xf32, #tpu.memory_space<vmem>>, vector<8x128xf32>
    tpu.vector_store %arg10[%c0_72, %c0_73], %271 {strides = array<i32>} : memref<8x128xf32, #tpu.memory_space<vmem>>, vector<8x128xf32>,
    %c0_i32_74 = arith.constant 0 : i32
    %273 = arith.cmpi eq, %arg0, %c0_i32_74 : i32
    %274 = arith.extui %273 : i1 to i32
    %c0_i32_75 = arith.constant 0 : i32
    %275 = arith.cmpi ne, %274, %c0_i32_75 : i32
    scf.if %275 {
      %c0_76 = arith.constant 0 : index
      %c0_77 = arith.constant 0 : index
      %276 = vector.load %arg6[%c0_76, %c0_77] : memref<128x128xf32, #tpu.memory_space<vmem>>, vector<128x128xf32>
      %cst_78 = arith.constant dense<0.000000e+00> : vector<8x128xf32>
      %277 = tpu.matmul %271, %276, %cst_78 {dimension_numbers = #tpu.dot_dimension_numbers<[1], [0], [0], [1], [0, 0, 1, 1], [], []>} : vector<8x128xf32>, vector<128x128xf32>, vector<8x128xf32> -> vector<8x128xf32>
      %c0_79 = arith.constant 0 : index
      %c0_80 = arith.constant 0 : index
      %278 = vector.load %arg7[%c0_79, %c0_80] : memref<1x128xf32, #tpu.memory_space<vmem>>, vector<1x128xf32>
      %279 = vector.broadcast %278 : vector<1x128xf32> to vector<8x128xf32>
      %280 = arith.addf %277, %279 : vector<8x128xf32>
      %c0_81 = arith.constant 0 : index
      %c0_82 = arith.constant 0 : index
      %281 = vector.load %arg8[%c0_81, %c0_82] : memref<8x128xf32, #tpu.memory_space<vmem>>, vector<8x128xf32>
      tpu.vector_store %arg8[%c0_81, %c0_82], %280 {strides = array<i32>} : memref<8x128xf32, #tpu.memory_space<vmem>>, vector<8x128xf32>,
    } else {
    }
    return
  }
  func.func @transform_0(%arg0: i32) -> (i32, i32) {
    %c0_i32 = arith.constant 0 : i32
    %c0_i32_0 = arith.constant 0 : i32
    return %arg0, %c0_i32 : i32, i32
  }
  func.func @transform_1(%arg0: i32) -> (i32, i32) {
    %c0_i32 = arith.constant 0 : i32
    %c0_i32_0 = arith.constant 0 : i32
    %c0_i32_1 = arith.constant 0 : i32
    return %c0_i32, %c0_i32_0 : i32, i32
  }
  func.func @transform_2(%arg0: i32) -> (i32, i32) {
    %c0_i32 = arith.constant 0 : i32
    %c0_i32_0 = arith.constant 0 : i32
    %c0_i32_1 = arith.constant 0 : i32
    return %c0_i32, %c0_i32_0 : i32, i32
  }
  func.func @transform_3(%arg0: i32) -> (i32, i32) {
    %c0_i32 = arith.constant 0 : i32
    %c0_i32_0 = arith.constant 0 : i32
    %c0_i32_1 = arith.constant 0 : i32
    return %c0_i32, %c0_i32_0 : i32, i32
  }
  func.func @transform_4(%arg0: i32) -> (i32, i32) {
    %c0_i32 = arith.constant 0 : i32
    %c0_i32_0 = arith.constant 0 : i32
    %c0_i32_1 = arith.constant 0 : i32
    return %c0_i32, %c0_i32_0 : i32, i32
  }
  func.func @transform_5(%arg0: i32) -> (i32, i32) {
    %c0_i32 = arith.constant 0 : i32
    %c0_i32_0 = arith.constant 0 : i32
    %c0_i32_1 = arith.constant 0 : i32
    return %c0_i32, %c0_i32_0 : i32, i32
  }
  func.func @transform_6(%arg0: i32) -> (i32, i32) {
    %c0_i32 = arith.constant 0 : i32
    %c0_i32_0 = arith.constant 0 : i32
    %c0_i32_1 = arith.constant 0 : i32
    return %c0_i32, %c0_i32_0 : i32, i32
  }
  func.func @transform_7(%arg0: i32) -> (i32, i32) {
    %c0_i32 = arith.constant 0 : i32
    %c0_i32_0 = arith.constant 0 : i32
    %c0_i32_1 = arith.constant 0 : i32
    return %c0_i32, %c0_i32_0 : i32, i32
  }
}

</mosaic_0001>

<llo_original>
// kernel: tpu_custom_call.1
$region0: #{tpu_custom_call.1}
  #allocation0 [shape = 'u32[]', space=smem, size = 0x4, offset = 0x4, fixed_abs, tag = 'smem constant byte address 0x4 - core index']
  #allocation1 [shape = 'u32[144,128]{1,0:T(1,128)}', space=vmem, size = 0x12000, scoped, tag = 'internal scratch']
  #allocation2 [shape = 'f32[64,384]{1,0:T(8,128)}', space=vmem, size = 0x18000, scoped, tag = 'scratch operand']
  #allocation3 [shape = 'f32[8,128]{1,0:T(8,128)}', space=vmem, size = 0x1000, scoped, tag = 'scratch operand']
  %s0 = inlined_call_operand.vmem [shape: f32[64,16], index: 0, kind: input, shape index: {}]
  %s1 = inlined_call_operand.vmem [shape: f32[16,384], index: 1, kind: input, shape index: {}]
  %s2 = inlined_call_operand.vmem [shape: f32[1,384], index: 2, kind: input, shape index: {}]
  %s3 = inlined_call_operand.hbm [shape: f32[128,384], index: 3, kind: input, shape index: {}]
  %s4 = inlined_call_operand.vmem [shape: f32[1,128], index: 4, kind: input, shape index: {}]
  %s5 = inlined_call_operand.hbm [shape: f32[128,128], index: 5, kind: input, shape index: {}]
  %s6 = inlined_call_operand.vmem [shape: f32[1,128], index: 6, kind: input, shape index: {}]
  %s7 = inlined_call_operand.hbm [shape: f32[8,128], index: 7, kind: output, shape index: {}]
  %s8 = sld [smem:[#allocation0]]
  $region54: #{tpu_custom_call.1} parent=0
    _
  %s10 = ssub.s32 1, %s8
  %s11 = scalar_select 0, %s10, %s8
  $region1: #{tpu_custom_call.1} parent=0
    #allocation4 [shape = 'u8[196608]{0}', space=vmem, size = 0x30000, scoped, tag = 'input window, operand 3, single buffered']
    #allocation5 [shape = 's32[1]{0}', space=sflag, size = 0x4, scoped, tag = 'scoped memory for tpu_custom_call.1']
    #allocation6 [shape = 's32[1]{0}', space=sflag, size = 0x4, scoped, tag = 'scoped memory for tpu_custom_call.1']
    #allocation7 [shape = 'u8[65536]{0}', space=vmem, size = 0x10000, scoped, tag = 'input window, operand 5, single buffered']
    #allocation8 [shape = 's32[1]{0}', space=sflag, size = 0x4, scoped, tag = 'scoped memory for tpu_custom_call.1']
    #allocation9 [shape = 'u8[4096]{0}', space=vmem, size = 0x1000, scoped, tag = 'output window, operand 0, single buffered']
    %12 = vsyncpa [#allocation5], 0
    %13 = vsyncpa [#allocation8], 0
    %14 = vsyncpa [#allocation6], 0
    // Predicated region
    $region2: #{tpu_custom_call.1} parent=1 // pred_check
      _
    $region3: #{tpu_custom_call.1} parent=1 // pred_check_branch
      %16 = sbr.rel (0) target = $region5
    $region4: #{tpu_custom_call.1} parent=1 // pred_region
      _
    $region5: #{tpu_custom_call.1} parent=1 // pred_fallthru
      _
    // Predicated region
    $region6: #{tpu_custom_call.1} parent=1 // pred_check
      _
    $region7: #{tpu_custom_call.1} parent=1 // pred_check_branch
      %18 = sbr.rel (0) target = $region9
    $region8: #{tpu_custom_call.1} parent=1 // pred_region
      _
    $region9: #{tpu_custom_call.1} parent=1 // pred_fallthru
      _
    // Predicated region
    $region10: #{tpu_custom_call.1} parent=1 // pred_check
      _
    $region11: #{tpu_custom_call.1} parent=1 // pred_check_branch
      %20 = sbr.rel (0) target = $region13
    $region12: #{tpu_custom_call.1} parent=1 // pred_region
      _
    $region13: #{tpu_custom_call.1} parent=1 // pred_fallthru
      _
    // Predicated region
    $region14: #{tpu_custom_call.1} parent=1 // pred_check
      _
    $region15: #{tpu_custom_call.1} parent=1 // pred_check_branch
      %22 = sbr.rel (0) target = $region17
    $region16: #{tpu_custom_call.1} parent=1 // pred_region
      %s24 = ssub.s32 6144, 6144
      %25 = vsyncadd [#allocation5], %s24
      %s26 = sshll.u32 [#allocation4], 4
      %s27 = int_to_ptr.vmem [resolvable:$true] %s26
      %32 = dma.hbm_to_vmem [thread:$0]  %s3, 6144, %s27, [#allocation5], 384, 384, 24
    $region17: #{tpu_custom_call.1} parent=1 // pred_fallthru
      _
    // Predicated region
    $region18: #{tpu_custom_call.1} parent=1 // pred_check
      _
    $region19: #{tpu_custom_call.1} parent=1 // pred_check_branch
      %34 = sbr.rel (0) target = $region21
    $region20: #{tpu_custom_call.1} parent=1 // pred_region
      _
    $region21: #{tpu_custom_call.1} parent=1 // pred_fallthru
      _
    // Predicated region
    $region22: #{tpu_custom_call.1} parent=1 // pred_check
      _
    $region23: #{tpu_custom_call.1} parent=1 // pred_check_branch
      %36 = sbr.rel (0) target = $region25
    $region24: #{tpu_custom_call.1} parent=1 // pred_region
      %s38 = ssub.s32 2048, 2048
      %39 = vsyncadd [#allocation8], %s38
      %s40 = sshll.u32 [#allocation7], 4
      %s41 = int_to_ptr.vmem [resolvable:$true] %s40
      %46 = dma.hbm_to_vmem [thread:$0]  %s5, 2048, %s41, [#allocation8], 128, 128, 8
    $region25: #{tpu_custom_call.1} parent=1 // pred_fallthru
      _
    // Predicated region
    $region26: #{tpu_custom_call.1} parent=1 // pred_check
      _
    $region27: #{tpu_custom_call.1} parent=1 // pred_check_branch
      %48 = sbr.rel (0) target = $region29
    $region28: #{tpu_custom_call.1} parent=1 // pred_region
      _
    $region29: #{tpu_custom_call.1} parent=1 // pred_fallthru
      _
    // Predicated region
    $region30: #{tpu_custom_call.1} parent=1 // pred_check
      _
    $region31: #{tpu_custom_call.1} parent=1 // pred_check_branch
      %50 = sbr.rel (0) target = $region33
    $region32: #{tpu_custom_call.1} parent=1 // pred_region
      %51 = dma.done [#allocation5], 6144
    $region33: #{tpu_custom_call.1} parent=1 // pred_fallthru
      _
    // Predicated region
    $region34: #{tpu_custom_call.1} parent=1 // pred_check
      _
    $region35: #{tpu_custom_call.1} parent=1 // pred_check_branch
      %53 = sbr.rel (0) target = $region37
    $region36: #{tpu_custom_call.1} parent=1 // pred_region
      %54 = dma.done [#allocation8], 2048
    $region37: #{tpu_custom_call.1} parent=1 // pred_fallthru
      _
    %p55 = scmp.eq.s32.totalorder 0, 0
    // Predicated region
    $region38: #{tpu_custom_call.1} parent=1 // pred_check
      %p56 = pneg %p55
    $region39: #{tpu_custom_call.1} parent=1 // pred_check_branch
      %58 = sbr.rel (%p56) target = $region41
    $region40: #{tpu_custom_call.1} parent=1 // pred_region
      %59 = vst [vmem:[#allocation3] sm:$0xff] 0.0
    $region41: #{tpu_custom_call.1} parent=1 // pred_fallthru
      _
    %v60 = vld [vmem:[%s0] sm:$0xff]
    %v61 = vld [vmem:[%s0 + $0x8] sm:$0xff]
    %v62 = vld [vmem:[%s0 + $0x10] sm:$0xff]
    %v63 = vld [vmem:[%s0 + $0x18] sm:$0xff]
    %v64 = vld [vmem:[%s0 + $0x20] sm:$0xff]
    %v65 = vld [vmem:[%s0 + $0x28] sm:$0xff]
    %v66 = vld [vmem:[%s0 + $0x30] sm:$0xff]
    %v67 = vld [vmem:[%s0 + $0x38] sm:$0xff]
    %v68 = vld [vmem:[%s1] sm:$0xff]
    %v69 = vld [vmem:[%s1 + $0x8] sm:$0xff]
    %v70 = vld [vmem:[%s1 + $0x10] sm:$0xff]
    %v71 = vld [vmem:[%s1 + $0x18] sm:$0xff]
    %v72 = vld [vmem:[%s1 + $0x20] sm:$0xff]
    %v73 = vld [vmem:[%s1 + $0x28] sm:$0xff]
    %v74 = vld [vmem:[%s2] sm:$0x7]
    %v76 = vlaneseq
    %v77 = vshrl.u32 %v76, 7
    %v78 = vsub.s32 0, %v77
    %v79 = vrot.slane %v74, %v78
    %v80 = vlaneseq
    %v81 = vshrl.u32 %v80, 7
    %v82 = vsub.s32 1, %v81
    %v83 = vrot.slane %v74, %v82
    %v84 = vlaneseq
    %v85 = vshrl.u32 %v84, 7
    %v86 = vsub.s32 2, %v85
    %v87 = vrot.slane %v74, %v86
    %vm91 = vcmask 130048
    %v93 = vsel %vm91, %v60, 0
    %v96 = vsel %vm91, %v61, 0
    %v99 = vsel %vm91, %v62, 0
    %v102 = vsel %vm91, %v63, 0
    %v105 = vsel %vm91, %v64, 0
    %v108 = vsel %vm91, %v65, 0
    %v111 = vsel %vm91, %v66, 0
    %v114 = vsel %vm91, %v67, 0
    %116 = vmatprep.subr.mxu0 %v69
    %117 = vmatpush1.msra.mxu0 %v68
    %118 = vmatprep.subr.mxu0 %v72
    %119 = vmatpush1.msra.mxu0 %v71
    %120 = vmatprep.subr.mxu0 0.0
    %121 = vmatpush1.msra.mxu0 0.0
    %122 = vmatprep.subr.mxu0 0.0
    %123 = vmatpush1.msra.mxu0 0.0
    %124 = vmatprep.subr.mxu0 0.0
    %125 = vmatpush1.msra.mxu0 0.0
    %126 = vmatprep.subr.mxu0 0.0
    %127 = vmatpush1.msra.mxu0 0.0
    %128 = vmatprep.subr.mxu0 0.0
    %129 = vmatpush1.msra.mxu0 0.0
    %130 = vmatprep.subr.mxu0 0.0
    %131 = vmatpush1.msra.mxu0 0.0
    %132 = vmatprep.subr.mxu0 0.0
    %133 = vmatpush1.msra.mxu0 0.0
    %134 = vmatprep.subr.mxu0 0.0
    %135 = vmatpush1.msra.mxu0 0.0
    %136 = vmatprep.subr.mxu0 0.0
    %137 = vmatpush1.msra.mxu0 0.0
    %138 = vmatprep.subr.mxu0 0.0
    %139 = vmatpush1.msra.mxu0 0.0
    %140 = vmatprep.subr.mxu0 0.0
    %141 = vmatpush1.msra.mxu0 0.0
    %142 = vmatprep.subr.mxu0 0.0
    %143 = vmatpush1.msra.mxu0 0.0
    %144 = vmatprep.subr.mxu0 0.0
    %145 = vmatpush1.msra.mxu0 0.0
    %146 = vmatprep.subr.mxu0 0.0
    %147 = vmatpush1.msra.mxu0 0.0
    %148 = vmatprep.subr.mxu0 0.0
    %149 = vmatpush1.msra.mxu0 0.0
    %150 = vmatprep.subr.mxu0 0.0
    %151 = vmatpush1.msra.mxu0 0.0
    %152 = vmatprep.subr.mxu0 0.0
    %153 = vmatpush1.msra.mxu0 0.0
    %154 = vmatprep.subr.mxu0 0.0
    %155 = vmatpush1.msra.mxu0 0.0
    %156 = vmatprep.subr.mxu0 0.0
    %157 = vmatpush1.msra.mxu0 0.0
    %158 = vmatprep.subr.mxu0 0.0
    %159 = vmatpush1.msra.mxu0 0.0
    %160 = vmatprep.subr.mxu0 0.0
    %161 = vmatpush1.msra.mxu0 0.0
    %162 = vmatprep.subr.mxu0 0.0
    %163 = vmatpush1.msra.mxu0 0.0
    %164 = vmatprep.subr.mxu0 0.0
    %165 = vmatpush1.msra.mxu0 0.0
    %166 = vmatprep.subr.mxu0 0.0
    %167 = vmatpush1.msra.mxu0 0.0
    %168 = vmatprep.subr.mxu0 0.0
    %169 = vmatpush1.msra.mxu0 0.0
    %170 = vmatprep.subr.mxu0 0.0
    %171 = vmatpush1.msra.mxu0 0.0
    %172 = vmatprep.subr.mxu0 0.0
    %173 = vmatpush1.msra.mxu0 0.0
    %174 = vmatprep.subr.mxu0 0.0
    %175 = vmatpush1.msra.mxu0 0.0
    %176 = vmatprep.subr.mxu0 0.0
    %177 = vmatpush1.msra.mxu0 0.0
    %178 = vmatprep.subr.mxu0 0.0
    %179 = vmatpush1.msra.mxu0 0.0
    %180 = vmatprep.mubr.f32.mxu0 0.0
    %181 = vmatmul.mubr.f32.gmra.mrb[0].mxu0 %v93
    %v182 = vpop.f32.mrb[0].mxu0
    %v183 = vadd.f32 %v79, %v182
    %v184 = vpop.f32.mrb[0].mxu0
    %v185 = vadd.f32 %v83, %v184
    %186 = vmatprep.mubr.f32.mxu0 0.0
    %187 = vmatmul.mubr.f32.gmra.mrb[0].mxu0 %v96
    %v188 = vpop.f32.mrb[0].mxu0
    %v189 = vadd.f32 %v79, %v188
    %v190 = vpop.f32.mrb[0].mxu0
    %v191 = vadd.f32 %v83, %v190
    %192 = vmatprep.mubr.f32.mxu0 0.0
    %193 = vmatmul.mubr.f32.gmra.mrb[0].mxu0 %v99
    %v194 = vpop.f32.mrb[0].mxu0
    %v195 = vadd.f32 %v79, %v194
    %v196 = vpop.f32.mrb[0].mxu0
    %v197 = vadd.f32 %v83, %v196
    %198 = vmatprep.mubr.f32.mxu0 0.0
    %199 = vmatmul.mubr.f32.gmra.mrb[0].mxu0 %v102
    %v200 = vpop.f32.mrb[0].mxu0
    %v201 = vadd.f32 %v79, %v200
    %v202 = vpop.f32.mrb[0].mxu0
    %v203 = vadd.f32 %v83, %v202
    %204 = vmatprep.mubr.f32.mxu0 0.0
    %205 = vmatmul.mubr.f32.gmra.mrb[0].mxu0 %v105
    %v206 = vpop.f32.mrb[0].mxu0
    %v207 = vadd.f32 %v79, %v206
    %v208 = vpop.f32.mrb[0].mxu0
    %v209 = vadd.f32 %v83, %v208
    %210 = vmatprep.mubr.f32.mxu0 0.0
    %211 = vmatmul.mubr.f32.gmra.mrb[0].mxu0 %v108
    %v212 = vpop.f32.mrb[0].mxu0
    %v213 = vadd.f32 %v79, %v212
    %v214 = vpop.f32.mrb[0].mxu0
    %v215 = vadd.f32 %v83, %v214
    %216 = vmatprep.mubr.f32.mxu0 0.0
    %217 = vmatmul.mubr.f32.gmra.mrb[0].mxu0 %v111
    %v218 = vpop.f32.mrb[0].mxu0
    %v219 = vadd.f32 %v79, %v218
    %v220 = vpop.f32.mrb[0].mxu0
    %v221 = vadd.f32 %v83, %v220
    %222 = vmatprep.mubr.f32.mxu0 0.0
    %223 = vmatmul.mubr.f32.gmra.mrb[0].mxu0 %v114
    %v224 = vpop.f32.mrb[0].mxu0
    %v225 = vadd.f32 %v79, %v224
    %v226 = vpop.f32.mrb[0].mxu0
    %v227 = vadd.f32 %v83, %v226
    %228 = vdwg.mxu0
    %229 = vmatprep.subr.mxu0 0.0
    %230 = vmatpush1.msra.mxu0 %v70
    %231 = vmatprep.subr.mxu0 0.0
    %232 = vmatpush1.msra.mxu0 %v73
    %233 = vmatprep.subr.mxu0 0.0
    %234 = vmatpush1.msra.mxu0 0.0
    %235 = vmatprep.subr.mxu0 0.0
    %236 = vmatpush1.msra.mxu0 0.0
    %237 = vmatprep.subr.mxu0 0.0
    %238 = vmatpush1.msra.mxu0 0.0
    %239 = vmatprep.subr.mxu0 0.0
    %240 = vmatpush1.msra.mxu0 0.0
    %241 = vmatprep.subr.mxu0 0.0
    %242 = vmatpush1.msra.mxu0 0.0
    %243 = vmatprep.subr.mxu0 0.0
    %244 = vmatpush1.msra.mxu0 0.0
    %245 = vmatprep.subr.mxu0 0.0
    %246 = vmatpush1.msra.mxu0 0.0
    %247 = vmatprep.subr.mxu0 0.0
    %248 = vmatpush1.msra.mxu0 0.0
    %249 = vmatprep.subr.mxu0 0.0
    %250 = vmatpush1.msra.mxu0 0.0
    %251 = vmatprep.subr.mxu0 0.0
    %252 = vmatpush1.msra.mxu0 0.0
    %253 = vmatprep.subr.mxu0 0.0
    %254 = vmatpush1.msra.mxu0 0.0
    %255 = vmatprep.subr.mxu0 0.0
    %256 = vmatpush1.msra.mxu0 0.0
    %257 = vmatprep.subr.mxu0 0.0
    %258 = vmatpush1.msra.mxu0 0.0
    %259 = vmatprep.subr.mxu0 0.0
    %260 = vmatpush1.msra.mxu0 0.0
    %261 = vmatprep.subr.mxu0 0.0
    %262 = vmatpush1.msra.mxu0 0.0
    %263 = vmatprep.subr.mxu0 0.0
    %264 = vmatpush1.msra.mxu0 0.0
    %265 = vmatprep.subr.mxu0 0.0
    %266 = vmatpush1.msra.mxu0 0.0
    %267 = vmatprep.subr.mxu0 0.0
    %268 = vmatpush1.msra.mxu0 0.0
    %269 = vmatprep.subr.mxu0 0.0
    %270 = vmatpush1.msra.mxu0 0.0
    %271 = vmatprep.subr.mxu0 0.0
    %272 = vmatpush1.msra.mxu0 0.0
    %273 = vmatprep.subr.mxu0 0.0
    %274 = vmatpush1.msra.mxu0 0.0
    %275 = vmatprep.subr.mxu0 0.0
    %276 = vmatpush1.msra.mxu0 0.0
    %277 = vmatprep.subr.mxu0 0.0
    %278 = vmatpush1.msra.mxu0 0.0
    %279 = vmatprep.subr.mxu0 0.0
    %280 = vmatpush1.msra.mxu0 0.0
    %281 = vmatprep.subr.mxu0 0.0
    %282 = vmatpush1.msra.mxu0 0.0
    %283 = vmatprep.subr.mxu0 0.0
    %284 = vmatpush1.msra.mxu0 0.0
    %285 = vmatprep.subr.mxu0 0.0
    %286 = vmatpush1.msra.mxu0 0.0
    %287 = vmatprep.subr.mxu0 0.0
    %288 = vmatpush1.msra.mxu0 0.0
    %289 = vmatprep.subr.mxu0 0.0
    %290 = vmatpush1.msra.mxu0 0.0
    %291 = vmatprep.subr.mxu0 0.0
    %292 = vmatpush1.msra.mxu0 0.0
    %293 = vmatprep.mubr.f32.mxu0 0.0
    %294 = vmatmul.mubr.f32.gmra.mrb[0].mxu0 %v93
    %v295 = vpop.f32.mrb[0].mxu0
    %v296 = vadd.f32 %v87, %v295
    %v297 = vpop.f32.mrb[0].mxu0
    %298 = vmatprep.mubr.f32.mxu0 0.0
    %299 = vmatmul.mubr.f32.gmra.mrb[0].mxu0 %v96
    %v300 = vpop.f32.mrb[0].mxu0
    %v301 = vadd.f32 %v87, %v300
    %v302 = vpop.f32.mrb[0].mxu0
    %303 = vmatprep.mubr.f32.mxu0 0.0
    %304 = vmatmul.mubr.f32.gmra.mrb[0].mxu0 %v99
    %v305 = vpop.f32.mrb[0].mxu0
    %v306 = vadd.f32 %v87, %v305
    %v307 = vpop.f32.mrb[0].mxu0
    %308 = vmatprep.mubr.f32.mxu0 0.0
    %309 = vmatmul.mubr.f32.gmra.mrb[0].mxu0 %v102
    %v310 = vpop.f32.mrb[0].mxu0
    %v311 = vadd.f32 %v87, %v310
    %v312 = vpop.f32.mrb[0].mxu0
    %313 = vmatprep.mubr.f32.mxu0 0.0
    %314 = vmatmul.mubr.f32.gmra.mrb[0].mxu0 %v105
    %v315 = vpop.f32.mrb[0].mxu0
    %v316 = vadd.f32 %v87, %v315
    %v317 = vpop.f32.mrb[0].mxu0
    %318 = vmatprep.mubr.f32.mxu0 0.0
    %319 = vmatmul.mubr.f32.gmra.mrb[0].mxu0 %v108
    %v320 = vpop.f32.mrb[0].mxu0
    %v321 = vadd.f32 %v87, %v320
    %v322 = vpop.f32.mrb[0].mxu0
    %323 = vmatprep.mubr.f32.mxu0 0.0
    %324 = vmatmul.mubr.f32.gmra.mrb[0].mxu0 %v111
    %v325 = vpop.f32.mrb[0].mxu0
    %v326 = vadd.f32 %v87, %v325
    %v327 = vpop.f32.mrb[0].mxu0
    %328 = vmatprep.mubr.f32.mxu0 0.0
    %329 = vmatmul.mubr.f32.gmra.mrb[0].mxu0 %v114
    %v330 = vpop.f32.mrb[0].mxu0
    %v331 = vadd.f32 %v87, %v330
    %v332 = vpop.f32.mrb[0].mxu0
    %333 = vdwg.mxu0
    %334 = vst [vmem:[#allocation2] sm:$0xff] %v183
    %335 = vst [vmem:[#allocation2 + $0x8] sm:$0xff] %v185
    %336 = vst [vmem:[#allocation2 + $0x10] sm:$0xff] %v296
    %337 = vst [vmem:[#allocation2 + $0x18] sm:$0xff] %v189
    %338 = vst [vmem:[#allocation2 + $0x20] sm:$0xff] %v191
    %339 = vst [vmem:[#allocation2 + $0x28] sm:$0xff] %v301
    %340 = vst [vmem:[#allocation2 + $0x30] sm:$0xff] %v195
    %341 = vst [vmem:[#allocation2 + $0x38] sm:$0xff] %v197
    %342 = vst [vmem:[#allocation2 + $0x40] sm:$0xff] %v306
    %343 = vst [vmem:[#allocation2 + $0x48] sm:$0xff] %v201
    %344 = vst [vmem:[#allocation2 + $0x50] sm:$0xff] %v203
    %345 = vst [vmem:[#allocation2 + $0x58] sm:$0xff] %v311
    %346 = vst [vmem:[#allocation2 + $0x60] sm:$0xff] %v207
    %347 = vst [vmem:[#allocation2 + $0x68] sm:$0xff] %v209
    %348 = vst [vmem:[#allocation2 + $0x70] sm:$0xff] %v316
    %349 = vst [vmem:[#allocation2 + $0x78] sm:$0xff] %v213
    %350 = vst [vmem:[#allocation2 + $0x80] sm:$0xff] %v215
    %351 = vst [vmem:[#allocation2 + $0x88] sm:$0xff] %v321
    %352 = vst [vmem:[#allocation2 + $0x90] sm:$0xff] %v219
    %353 = vst [vmem:[#allocation2 + $0x98] sm:$0xff] %v221
    %354 = vst [vmem:[#allocation2 + $0xa0] sm:$0xff] %v326
    %355 = vst [vmem:[#allocation2 + $0xa8] sm:$0xff] %v225
    %356 = vst [vmem:[#allocation2 + $0xb0] sm:$0xff] %v227
    %357 = vst [vmem:[#allocation2 + $0xb8] sm:$0xff] %v331
    %v358 = vld [vmem:[#allocation4] sm:$0xff]
    %v359 = vld [vmem:[#allocation4 + $0x8] sm:$0xff]
    %v360 = vld [vmem:[#allocation4 + $0x18] sm:$0xff]
    %v361 = vld [vmem:[#allocation4 + $0x20] sm:$0xff]
    %v362 = vld [vmem:[#allocation4 + $0x30] sm:$0xff]
    %v363 = vld [vmem:[#allocation4 + $0x38] sm:$0xff]
    %v364 = vld [vmem:[#allocation4 + $0x48] sm:$0xff]
    %v365 = vld [vmem:[#allocation4 + $0x50] sm:$0xff]
    %v366 = vld [vmem:[#allocation4 + $0x60] sm:$0xff]
    %v367 = vld [vmem:[#allocation4 + $0x68] sm:$0xff]
    %v368 = vld [vmem:[#allocation4 + $0x78] sm:$0xff]
    %v369 = vld [vmem:[#allocation4 + $0x80] sm:$0xff]
    %v370 = vld [vmem:[#allocation4 + $0x90] sm:$0xff]
    %v371 = vld [vmem:[#allocation4 + $0x98] sm:$0xff]
    %v372 = vld [vmem:[#allocation4 + $0xa8] sm:$0xff]
    %v373 = vld [vmem:[#allocation4 + $0xb0] sm:$0xff]
    %v374 = vld [vmem:[#allocation4 + $0xc0] sm:$0xff]
    %v375 = vld [vmem:[#allocation4 + $0xc8] sm:$0xff]
    %v376 = vld [vmem:[#allocation4 + $0xd8] sm:$0xff]
    %v377 = vld [vmem:[#allocation4 + $0xe0] sm:$0xff]
    %v378 = vld [vmem:[#allocation4 + $0xf0] sm:$0xff]
    %v379 = vld [vmem:[#allocation4 + $0xf8] sm:$0xff]
    %v380 = vld [vmem:[#allocation4 + $0x108] sm:$0xff]
    %v381 = vld [vmem:[#allocation4 + $0x110] sm:$0xff]
    %v382 = vld [vmem:[#allocation4 + $0x120] sm:$0xff]
    %v383 = vld [vmem:[#allocation4 + $0x128] sm:$0xff]
    %v384 = vld [vmem:[#allocation4 + $0x138] sm:$0xff]
    %v385 = vld [vmem:[#allocation4 + $0x140] sm:$0xff]
    %v386 = vld [vmem:[#allocation4 + $0x150] sm:$0xff]
    %v387 = vld [vmem:[#allocation4 + $0x158] sm:$0xff]
    %v388 = vld [vmem:[#allocation4 + $0x168] sm:$0xff]
    %v389 = vld [vmem:[#allocation4 + $0x170] sm:$0xff]
    %v390 = vld [vmem:[#allocation4 + $0x10] sm:$0xff]
    %v391 = vld [vmem:[#allocation4 + $0x28] sm:$0xff]
    %v392 = vld [vmem:[#allocation4 + $0x40] sm:$0xff]
    %v393 = vld [vmem:[#allocation4 + $0x58] sm:$0xff]
    %v394 = vld [vmem:[#allocation4 + $0x70] sm:$0xff]
    %v395 = vld [vmem:[#allocation4 + $0x88] sm:$0xff]
    %v396 = vld [vmem:[#allocation4 + $0xa0] sm:$0xff]
    %v397 = vld [vmem:[#allocation4 + $0xb8] sm:$0xff]
    %v398 = vld [vmem:[#allocation4 + $0xd0] sm:$0xff]
    %v399 = vld [vmem:[#allocation4 + $0xe8] sm:$0xff]
    %v400 = vld [vmem:[#allocation4 + $0x100] sm:$0xff]
    %v401 = vld [vmem:[#allocation4 + $0x118] sm:$0xff]
    %v402 = vld [vmem:[#allocation4 + $0x130] sm:$0xff]
    %v403 = vld [vmem:[#allocation4 + $0x148] sm:$0xff]
    %v404 = vld [vmem:[#allocation4 + $0x160] sm:$0xff]
    %v405 = vld [vmem:[#allocation4 + $0x178] sm:$0xff]
    %v406 = vld [vmem:[%s4] sm:$0x1]
    %v408 = vlaneseq
    %v409 = vshrl.u32 %v408, 7
    %v410 = vsub.s32 0, %v409
    %v411 = vrot.slane %v406, %v410
    %v413 = vld [vmem:[#allocation3] sm:$0xff]
    %s414 = smul.u32 0, 3
    %s415 = smul.addr %s414, 8
    %s416 = scalar_lea.vmem [#allocation2], %s415
    %v417 = vld [vmem:[%s416] sm:$0xff]
    %v418 = vld [vmem:[%s416 + $0x8] sm:$0xff]
    %v419 = vld [vmem:[%s416 + $0x10] sm:$0xff]
    %420 = vmatprep.subr.mxu0 %v359
    %421 = vmatpush1.msra.mxu0 %v358
    %422 = vmatprep.subr.mxu0 %v361
    %423 = vmatpush1.msra.mxu0 %v360
    %424 = vmatprep.subr.mxu0 %v363
    %425 = vmatpush1.msra.mxu0 %v362
    %426 = vmatprep.subr.mxu0 %v365
    %427 = vmatpush1.msra.mxu0 %v364
    %428 = vmatprep.subr.mxu0 %v367
    %429 = vmatpush1.msra.mxu0 %v366
    %430 = vmatprep.subr.mxu0 %v369
    %431 = vmatpush1.msra.mxu0 %v368
    %432 = vmatprep.subr.mxu0 %v371
    %433 = vmatpush1.msra.mxu0 %v370
    %434 = vmatprep.subr.mxu0 %v373
    %435 = vmatpush1.msra.mxu0 %v372
    %436 = vmatprep.subr.mxu0 %v375
    %437 = vmatpush1.msra.mxu0 %v374
    %438 = vmatprep.subr.mxu0 %v377
    %439 = vmatpush1.msra.mxu0 %v376
    %440 = vmatprep.subr.mxu0 %v379
    %441 = vmatpush1.msra.mxu0 %v378
    %442 = vmatprep.subr.mxu0 %v381
    %443 = vmatpush1.msra.mxu0 %v380
    %444 = vmatprep.subr.mxu0 %v383
    %445 = vmatpush1.msra.mxu0 %v382
    %446 = vmatprep.subr.mxu0 %v385
    %447 = vmatpush1.msra.mxu0 %v384
    %448 = vmatprep.subr.mxu0 %v387
    %449 = vmatpush1.msra.mxu0 %v386
    %450 = vmatprep.subr.mxu0 %v389
    %451 = vmatpush1.msra.mxu0 %v388
    %452 = vmatprep.subr.mxu0 0.0
    %453 = vmatpush1.msra.mxu0 0.0
    %454 = vmatprep.subr.mxu0 0.0
    %455 = vmatpush1.msra.mxu0 0.0
    %456 = vmatprep.subr.mxu0 0.0
    %457 = vmatpush1.msra.mxu0 0.0
    %458 = vmatprep.subr.mxu0 0.0
    %459 = vmatpush1.msra.mxu0 0.0
    %460 = vmatprep.subr.mxu0 0.0
    %461 = vmatpush1.msra.mxu0 0.0
    %462 = vmatprep.subr.mxu0 0.0
    %463 = vmatpush1.msra.mxu0 0.0
    %464 = vmatprep.subr.mxu0 0.0
    %465 = vmatpush1.msra.mxu0 0.0
    %466 = vmatprep.subr.mxu0 0.0
    %467 = vmatpush1.msra.mxu0 0.0
    %468 = vmatprep.subr.mxu0 0.0
    %469 = vmatpush1.msra.mxu0 0.0
    %470 = vmatprep.subr.mxu0 0.0
    %471 = vmatpush1.msra.mxu0 0.0
    %472 = vmatprep.subr.mxu0 0.0
    %473 = vmatpush1.msra.mxu0 0.0
    %474 = vmatprep.subr.mxu0 0.0
    %475 = vmatpush1.msra.mxu0 0.0
    %476 = vmatprep.subr.mxu0 0.0
    %477 = vmatpush1.msra.mxu0 0.0
    %478 = vmatprep.subr.mxu0 0.0
    %479 = vmatpush1.msra.mxu0 0.0
    %480 = vmatprep.subr.mxu0 0.0
    %481 = vmatpush1.msra.mxu0 0.0
    %482 = vmatprep.subr.mxu0 0.0
    %483 = vmatpush1.msra.mxu0 0.0
    %484 = vmatprep.mubr.f32.mxu0 0.0
    %485 = vmatmul.mubr.f32.gmra.mrb[0].mxu0 %v413
    %v486 = vpop.f32.mrb[0].mxu0
    %v487 = vadd.f32 0.0, %v486
    %v488 = vpop.f32.mrb[0].mxu0
    %v489 = vadd.f32 0.0, %v488
    %490 = vdwg.mxu0
    %v491 = vadd.f32 %v417, %v487
    %v492 = vxor.u32 %v491, 2147483648
    %v493 = vmul.f32 %v492, 1.442695
    %v494 = vpow.pop %v493
    %v495 = vadd.f32 %v494, 1.0
    %v496 = vrcp.pop %v495
    %v497 = vmul.f32 1.0, %v496
    %v498 = vadd.f32 %v418, %v489
    %v499 = vxor.u32 %v498, 2147483648
    %v500 = vmul.f32 %v499, 1.442695
    %v501 = vpow.pop %v500
    %v502 = vadd.f32 %v501, 1.0
    %v503 = vrcp.pop %v502
    %v504 = vmul.f32 1.0, %v503
    %505 = vmatprep.subr.mxu0 0.0
    %506 = vmatpush1.msra.mxu0 %v390
    %507 = vmatprep.subr.mxu0 0.0
    %508 = vmatpush1.msra.mxu0 %v391
    %509 = vmatprep.subr.mxu0 0.0
    %510 = vmatpush1.msra.mxu0 %v392
    %511 = vmatprep.subr.mxu0 0.0
    %512 = vmatpush1.msra.mxu0 %v393
    %513 = vmatprep.subr.mxu0 0.0
    %514 = vmatpush1.msra.mxu0 %v394
    %515 = vmatprep.subr.mxu0 0.0
    %516 = vmatpush1.msra.mxu0 %v395
    %517 = vmatprep.subr.mxu0 0.0
    %518 = vmatpush1.msra.mxu0 %v396
    %519 = vmatprep.subr.mxu0 0.0
    %520 = vmatpush1.msra.mxu0 %v397
    %521 = vmatprep.subr.mxu0 0.0
    %522 = vmatpush1.msra.mxu0 %v398
    %523 = vmatprep.subr.mxu0 0.0
    %524 = vmatpush1.msra.mxu0 %v399
    %525 = vmatprep.subr.mxu0 0.0
    %526 = vmatpush1.msra.mxu0 %v400
    %527 = vmatprep.subr.mxu0 0.0
    %528 = vmatpush1.msra.mxu0 %v401
    %529 = vmatprep.subr.mxu0 0.0
    %530 = vmatpush1.msra.mxu0 %v402
    %531 = vmatprep.subr.mxu0 0.0
    %532 = vmatpush1.msra.mxu0 %v403
    %533 = vmatprep.subr.mxu0 0.0
    %534 = vmatpush1.msra.mxu0 %v404
    %535 = vmatprep.subr.mxu0 0.0
    %536 = vmatpush1.msra.mxu0 %v405
    %537 = vmatprep.subr.mxu0 0.0
    %538 = vmatpush1.msra.mxu0 0.0
    %539 = vmatprep.subr.mxu0 0.0
    %540 = vmatpush1.msra.mxu0 0.0
    %541 = vmatprep.subr.mxu0 0.0
    %542 = vmatpush1.msra.mxu0 0.0
    %543 = vmatprep.subr.mxu0 0.0
    %544 = vmatpush1.msra.mxu0 0.0
    %545 = vmatprep.subr.mxu0 0.0
    %546 = vmatpush1.msra.mxu0 0.0
    %547 = vmatprep.subr.mxu0 0.0
    %548 = vmatpush1.msra.mxu0 0.0
    %549 = vmatprep.subr.mxu0 0.0
    %550 = vmatpush1.msra.mxu0 0.0
    %551 = vmatprep.subr.mxu0 0.0
    %552 = vmatpush1.msra.mxu0 0.0
    %553 = vmatprep.subr.mxu0 0.0
    %554 = vmatpush1.msra.mxu0 0.0
    %555 = vmatprep.subr.mxu0 0.0
    %556 = vmatpush1.msra.mxu0 0.0
    %557 = vmatprep.subr.mxu0 0.0
    %558 = vmatpush1.msra.mxu0 0.0
    %559 = vmatprep.subr.mxu0 0.0
    %560 = vmatpush1.msra.mxu0 0.0
    %561 = vmatprep.subr.mxu0 0.0
    %562 = vmatpush1.msra.mxu0 0.0
    %563 = vmatprep.subr.mxu0 0.0
    %564 = vmatpush1.msra.mxu0 0.0
    %565 = vmatprep.subr.mxu0 0.0
    %566 = vmatpush1.msra.mxu0 0.0
    %567 = vmatprep.subr.mxu0 0.0
    %568 = vmatpush1.msra.mxu0 0.0
    %569 = vmatprep.mubr.f32.mxu0 0.0
    %570 = vmatmul.mubr.f32.gmra.mrb[0].mxu0 %v413
    %v571 = vpop.f32.mrb[0].mxu0
    %v572 = vadd.f32 %v411, %v571
    %v573 = vpop.f32.mrb[0].mxu0
    %574 = vdwg.mxu0
    %v575 = vmul.f32 %v497, %v572
    %v576 = vadd.f32 %v419, %v575
    %v577 = vtanh.pop %v576
    %v578 = vsub.f32 1.0, %v504
    %v579 = vmul.f32 %v578, %v577
    %v580 = vmul.f32 %v504, %v413
    %v581 = vadd.f32 %v579, %v580
    %s582 = smul.u32 1, 3
    %s583 = smul.addr %s582, 8
    %s584 = scalar_lea.vmem [#allocation2], %s583
    %v585 = vld [vmem:[%s584] sm:$0xff]
    %v586 = vld [vmem:[%s584 + $0x8] sm:$0xff]
    %v587 = vld [vmem:[%s584 + $0x10] sm:$0xff]
    %588 = vmatprep.subr.mxu0 %v359
    %589 = vmatpush1.msra.mxu0 %v358
    %590 = vmatprep.subr.mxu0 %v361
    %591 = vmatpush1.msra.mxu0 %v360
    %592 = vmatprep.subr.mxu0 %v363
    %593 = vmatpush1.msra.mxu0 %v362
    %594 = vmatprep.subr.mxu0 %v365
    %595 = vmatpush1.msra.mxu0 %v364
    %596 = vmatprep.subr.mxu0 %v367
    %597 = vmatpush1.msra.mxu0 %v366
    %598 = vmatprep.subr.mxu0 %v369
    %599 = vmatpush1.msra.mxu0 %v368
    %600 = vmatprep.subr.mxu0 %v371
    %601 = vmatpush1.msra.mxu0 %v370
    %602 = vmatprep.subr.mxu0 %v373
    %603 = vmatpush1.msra.mxu0 %v372
    %604 = vmatprep.subr.mxu0 %v375
    %605 = vmatpush1.msra.mxu0 %v374
    %606 = vmatprep.subr.mxu0 %v377
    %607 = vmatpush1.msra.mxu0 %v376
    %608 = vmatprep.subr.mxu0 %v379
    %609 = vmatpush1.msra.mxu0 %v378
    %610 = vmatprep.subr.mxu0 %v381
    %611 = vmatpush1.msra.mxu0 %v380
    %612 = vmatprep.subr.mxu0 %v383
    %613 = vmatpush1.msra.mxu0 %v382
    %614 = vmatprep.subr.mxu0 %v385
    %615 = vmatpush1.msra.mxu0 %v384
    %616 = vmatprep.subr.mxu0 %v387
    %617 = vmatpush1.msra.mxu0 %v386
    %618 = vmatprep.subr.mxu0 %v389
    %619 = vmatpush1.msra.mxu0 %v388
    %620 = vmatprep.subr.mxu0 0.0
    %621 = vmatpush1.msra.mxu0 0.0
    %622 = vmatprep.subr.mxu0 0.0
    %623 = vmatpush1.msra.mxu0 0.0
    %624 = vmatprep.subr.mxu0 0.0
    %625 = vmatpush1.msra.mxu0 0.0
    %626 = vmatprep.subr.mxu0 0.0
    %627 = vmatpush1.msra.mxu0 0.0
    %628 = vmatprep.subr.mxu0 0.0
    %629 = vmatpush1.msra.mxu0 0.0
    %630 = vmatprep.subr.mxu0 0.0
    %631 = vmatpush1.msra.mxu0 0.0
    %632 = vmatprep.subr.mxu0 0.0
    %633 = vmatpush1.msra.mxu0 0.0
    %634 = vmatprep.subr.mxu0 0.0
    %635 = vmatpush1.msra.mxu0 0.0
    %636 = vmatprep.subr.mxu0 0.0
    %637 = vmatpush1.msra.mxu0 0.0
    %638 = vmatprep.subr.mxu0 0.0
    %639 = vmatpush1.msra.mxu0 0.0
    %640 = vmatprep.subr.mxu0 0.0
    %641 = vmatpush1.msra.mxu0 0.0
    %642 = vmatprep.subr.mxu0 0.0
    %643 = vmatpush1.msra.mxu0 0.0
    %644 = vmatprep.subr.mxu0 0.0
    %645 = vmatpush1.msra.mxu0 0.0
    %646 = vmatprep.subr.mxu0 0.0
    %647 = vmatpush1.msra.mxu0 0.0
    %648 = vmatprep.subr.mxu0 0.0
    %649 = vmatpush1.msra.mxu0 0.0
    %650 = vmatprep.subr.mxu0 0.0
    %651 = vmatpush1.msra.mxu0 0.0
    %652 = vmatprep.mubr.f32.mxu0 0.0
    %653 = vmatmul.mubr.f32.gmra.mrb[0].mxu0 %v581
    %v654 = vpop.f32.mrb[0].mxu0
    %v655 = vadd.f32 0.0, %v654
    %v656 = vpop.f32.mrb[0].mxu0
    %v657 = vadd.f32 0.0, %v656
    %658 = vdwg.mxu0
    %v659 = vadd.f32 %v585, %v655
    %v660 = vxor.u32 %v659, 2147483648
    %v661 = vmul.f32 %v660, 1.442695
    %v662 = vpow.pop %v661
    %v663 = vadd.f32 %v662, 1.0
    %v664 = vrcp.pop %v663
    %v665 = vmul.f32 1.0, %v664
    %v666 = vadd.f32 %v586, %v657
    %v667 = vxor.u32 %v666, 2147483648
    %v668 = vmul.f32 %v667, 1.442695
    %v669 = vpow.pop %v668
    %v670 = vadd.f32 %v669, 1.0
    %v671 = vrcp.pop %v670
    %v672 = vmul.f32 1.0, %v671
    %673 = vmatprep.subr.mxu0 0.0
    %674 = vmatpush1.msra.mxu0 %v390
    %675 = vmatprep.subr.mxu0 0.0
    %676 = vmatpush1.msra.mxu0 %v391
    %677 = vmatprep.subr.mxu0 0.0
    %678 = vmatpush1.msra.mxu0 %v392
    %679 = vmatprep.subr.mxu0 0.0
    %680 = vmatpush1.msra.mxu0 %v393
    %681 = vmatprep.subr.mxu0 0.0
    %682 = vmatpush1.msra.mxu0 %v394
    %683 = vmatprep.subr.mxu0 0.0
    %684 = vmatpush1.msra.mxu0 %v395
    %685 = vmatprep.subr.mxu0 0.0
    %686 = vmatpush1.msra.mxu0 %v396
    %687 = vmatprep.subr.mxu0 0.0
    %688 = vmatpush1.msra.mxu0 %v397
    %689 = vmatprep.subr.mxu0 0.0
    %690 = vmatpush1.msra.mxu0 %v398
    %691 = vmatprep.subr.mxu0 0.0
    %692 = vmatpush1.msra.mxu0 %v399
    %693 = vmatprep.subr.mxu0 0.0
    %694 = vmatpush1.msra.mxu0 %v400
    %695 = vmatprep.subr.mxu0 0.0
    %696 = vmatpush1.msra.mxu0 %v401
    %697 = vmatprep.subr.mxu0 0.0
    %698 = vmatpush1.msra.mxu0 %v402
    %699 = vmatprep.subr.mxu0 0.0
    %700 = vmatpush1.msra.mxu0 %v403
    %701 = vmatprep.subr.mxu0 0.0
    %702 = vmatpush1.msra.mxu0 %v404
    %703 = vmatprep.subr.mxu0 0.0
    %704 = vmatpush1.msra.mxu0 %v405
    %705 = vmatprep.subr.mxu0 0.0
    %706 = vmatpush1.msra.mxu0 0.0
    %707 = vmatprep.subr.mxu0 0.0
    %708 = vmatpush1.msra.mxu0 0.0
    %709 = vmatprep.subr.mxu0 0.0
    %710 = vmatpush1.msra.mxu0 0.0
    %711 = vmatprep.subr.mxu0 0.0
    %712 = vmatpush1.msra.mxu0 0.0
    %713 = vmatprep.subr.mxu0 0.0
    %714 = vmatpush1.msra.mxu0 0.0
    %715 = vmatprep.subr.mxu0 0.0
    %716 = vmatpush1.msra.mxu0 0.0
    %717 = vmatprep.subr.mxu0 0.0
    %718 = vmatpush1.msra.mxu0 0.0
    %719 = vmatprep.subr.mxu0 0.0
    %720 = vmatpush1.msra.mxu0 0.0
    %721 = vmatprep.subr.mxu0 0.0
    %722 = vmatpush1.msra.mxu0 0.0
    %723 = vmatprep.subr.mxu0 0.0
    %724 = vmatpush1.msra.mxu0 0.0
    %725 = vmatprep.subr.mxu0 0.0
    %726 = vmatpush1.msra.mxu0 0.0
    %727 = vmatprep.subr.mxu0 0.0
    %728 = vmatpush1.msra.mxu0 0.0
    %729 = vmatprep.subr.mxu0 0.0
    %730 = vmatpush1.msra.mxu0 0.0
    %731 = vmatprep.subr.mxu0 0.0
    %732 = vmatpush1.msra.mxu0 0.0
    %733 = vmatprep.subr.mxu0 0.0
    %734 = vmatpush1.msra.mxu0 0.0
    %735 = vmatprep.subr.mxu0 0.0
    %736 = vmatpush1.msra.mxu0 0.0
    %737 = vmatprep.mubr.f32.mxu0 0.0
    %738 = vmatmul.mubr.f32.gmra.mrb[0].mxu0 %v581
    %v739 = vpop.f32.mrb[0].mxu0
    %v740 = vadd.f32 %v411, %v739
    %v741 = vpop.f32.mrb[0].mxu0
    %742 = vdwg.mxu0
    %v743 = vmul.f32 %v665, %v740
    %v744 = vadd.f32 %v587, %v743
    %v745 = vtanh.pop %v744
    %v746 = vsub.f32 1.0, %v672
    %v747 = vmul.f32 %v746, %v745
    %v748 = vmul.f32 %v672, %v581
    %v749 = vadd.f32 %v747, %v748
    %s750 = smul.u32 2, 3
    %s751 = smul.addr %s750, 8
    %s752 = scalar_lea.vmem [#allocation2], %s751
    %v753 = vld [vmem:[%s752] sm:$0xff]
    %v754 = vld [vmem:[%s752 + $0x8] sm:$0xff]
    %v755 = vld [vmem:[%s752 + $0x10] sm:$0xff]
    %756 = vmatprep.subr.mxu0 %v359
    %757 = vmatpush1.msra.mxu0 %v358
    %758 = vmatprep.subr.mxu0 %v361
    %759 = vmatpush1.msra.mxu0 %v360
    %760 = vmatprep.subr.mxu0 %v363
    %761 = vmatpush1.msra.mxu0 %v362
    %762 = vmatprep.subr.mxu0 %v365
    %763 = vmatpush1.msra.mxu0 %v364
    %764 = vmatprep.subr.mxu0 %v367
    %765 = vmatpush1.msra.mxu0 %v366
    %766 = vmatprep.subr.mxu0 %v369
    %767 = vmatpush1.msra.mxu0 %v368
    %768 = vmatprep.subr.mxu0 %v371
    %769 = vmatpush1.msra.mxu0 %v370
    %770 = vmatprep.subr.mxu0 %v373
    %771 = vmatpush1.msra.mxu0 %v372
    %772 = vmatprep.subr.mxu0 %v375
    %773 = vmatpush1.msra.mxu0 %v374
    %774 = vmatprep.subr.mxu0 %v377
    %775 = vmatpush1.msra.mxu0 %v376
    %776 = vmatprep.subr.mxu0 %v379
    %777 = vmatpush1.msra.mxu0 %v378
    %778 = vmatprep.subr.mxu0 %v381
    %779 = vmatpush1.msra.mxu0 %v380
    %780 = vmatprep.subr.mxu0 %v383
    %781 = vmatpush1.msra.mxu0 %v382
    %782 = vmatprep.subr.mxu0 %v385
    %783 = vmatpush1.msra.mxu0 %v384
    %784 = vmatprep.subr.mxu0 %v387
    %785 = vmatpush1.msra.mxu0 %v386
    %786 = vmatprep.subr.mxu0 %v389
    %787 = vmatpush1.msra.mxu0 %v388
    %788 = vmatprep.subr.mxu0 0.0
    %789 = vmatpush1.msra.mxu0 0.0
    %790 = vmatprep.subr.mxu0 0.0
    %791 = vmatpush1.msra.mxu0 0.0
    %792 = vmatprep.subr.mxu0 0.0
    %793 = vmatpush1.msra.mxu0 0.0
    %794 = vmatprep.subr.mxu0 0.0
    %795 = vmatpush1.msra.mxu0 0.0
    %796 = vmatprep.subr.mxu0 0.0
    %797 = vmatpush1.msra.mxu0 0.0
    %798 = vmatprep.subr.mxu0 0.0
    %799 = vmatpush1.msra.mxu0 0.0
    %800 = vmatprep.subr.mxu0 0.0
    %801 = vmatpush1.msra.mxu0 0.0
    %802 = vmatprep.subr.mxu0 0.0
    %803 = vmatpush1.msra.mxu0 0.0
    %804 = vmatprep.subr.mxu0 0.0
    %805 = vmatpush1.msra.mxu0 0.0
    %806 = vmatprep.subr.mxu0 0.0
    %807 = vmatpush1.msra.mxu0 0.0
    %808 = vmatprep.subr.mxu0 0.0
    %809 = vmatpush1.msra.mxu0 0.0
    %810 = vmatprep.subr.mxu0 0.0
    %811 = vmatpush1.msra.mxu0 0.0
    %812 = vmatprep.subr.mxu0 0.0
    %813 = vmatpush1.msra.mxu0 0.0
    %814 = vmatprep.subr.mxu0 0.0
    %815 = vmatpush1.msra.mxu0 0.0
    %816 = vmatprep.subr.mxu0 0.0
    %817 = vmatpush1.msra.mxu0 0.0
    %818 = vmatprep.subr.mxu0 0.0
    %819 = vmatpush1.msra.mxu0 0.0
    %820 = vmatprep.mubr.f32.mxu0 0.0
    %821 = vmatmul.mubr.f32.gmra.mrb[0].mxu0 %v749
    %v822 = vpop.f32.mrb[0].mxu0
    %v823 = vadd.f32 0.0, %v822
    %v824 = vpop.f32.mrb[0].mxu0
    %v825 = vadd.f32 0.0, %v824
    %826 = vdwg.mxu0
    %v827 = vadd.f32 %v753, %v823
    %v828 = vxor.u32 %v827, 2147483648
    %v829 = vmul.f32 %v828, 1.442695
    %v830 = vpow.pop %v829
    %v831 = vadd.f32 %v830, 1.0
    %v832 = vrcp.pop %v831
    %v833 = vmul.f32 1.0, %v832
    %v834 = vadd.f32 %v754, %v825
    %v835 = vxor.u32 %v834, 2147483648
    %v836 = vmul.f32 %v835, 1.442695
    %v837 = vpow.pop %v836
    %v838 = vadd.f32 %v837, 1.0
    %v839 = vrcp.pop %v838
    %v840 = vmul.f32 1.0, %v839
    %841 = vmatprep.subr.mxu0 0.0
    %842 = vmatpush1.msra.mxu0 %v390
    %843 = vmatprep.subr.mxu0 0.0
    %844 = vmatpush1.msra.mxu0 %v391
    %845 = vmatprep.subr.mxu0 0.0
    %846 = vmatpush1.msra.mxu0 %v392
    %847 = vmatprep.subr.mxu0 0.0
    %848 = vmatpush1.msra.mxu0 %v393
    %849 = vmatprep.subr.mxu0 0.0
    %850 = vmatpush1.msra.mxu0 %v394
    %851 = vmatprep.subr.mxu0 0.0
    %852 = vmatpush1.msra.mxu0 %v395
    %853 = vmatprep.subr.mxu0 0.0
    %854 = vmatpush1.msra.mxu0 %v396
    %855 = vmatprep.subr.mxu0 0.0
    %856 = vmatpush1.msra.mxu0 %v397
    %857 = vmatprep.subr.mxu0 0.0
    %858 = vmatpush1.msra.mxu0 %v398
    %859 = vmatprep.subr.mxu0 0.0
    %860 = vmatpush1.msra.mxu0 %v399
    %861 = vmatprep.subr.mxu0 0.0
    %862 = vmatpush1.msra.mxu0 %v400
    %863 = vmatprep.subr.mxu0 0.0
    %864 = vmatpush1.msra.mxu0 %v401
    %865 = vmatprep.subr.mxu0 0.0
    %866 = vmatpush1.msra.mxu0 %v402
    %867 = vmatprep.subr.mxu0 0.0
    %868 = vmatpush1.msra.mxu0 %v403
    %869 = vmatprep.subr.mxu0 0.0
    %870 = vmatpush1.msra.mxu0 %v404
    %871 = vmatprep.subr.mxu0 0.0
    %872 = vmatpush1.msra.mxu0 %v405
    %873 = vmatprep.subr.mxu0 0.0
    %874 = vmatpush1.msra.mxu0 0.0
    %875 = vmatprep.subr.mxu0 0.0
    %876 = vmatpush1.msra.mxu0 0.0
    %877 = vmatprep.subr.mxu0 0.0
    %878 = vmatpush1.msra.mxu0 0.0
    %879 = vmatprep.subr.mxu0 0.0
    %880 = vmatpush1.msra.mxu0 0.0
    %881 = vmatprep.subr.mxu0 0.0
    %882 = vmatpush1.msra.mxu0 0.0
    %883 = vmatprep.subr.mxu0 0.0
    %884 = vmatpush1.msra.mxu0 0.0
    %885 = vmatprep.subr.mxu0 0.0
    %886 = vmatpush1.msra.mxu0 0.0
    %887 = vmatprep.subr.mxu0 0.0
    %888 = vmatpush1.msra.mxu0 0.0
    %889 = vmatprep.subr.mxu0 0.0
    %890 = vmatpush1.msra.mxu0 0.0
    %891 = vmatprep.subr.mxu0 0.0
    %892 = vmatpush1.msra.mxu0 0.0
    %893 = vmatprep.subr.mxu0 0.0
    %894 = vmatpush1.msra.mxu0 0.0
    %895 = vmatprep.subr.mxu0 0.0
    %896 = vmatpush1.msra.mxu0 0.0
    %897 = vmatprep.subr.mxu0 0.0
    %898 = vmatpush1.msra.mxu0 0.0
    %899 = vmatprep.subr.mxu0 0.0
    %900 = vmatpush1.msra.mxu0 0.0
    %901 = vmatprep.subr.mxu0 0.0
    %902 = vmatpush1.msra.mxu0 0.0
    %903 = vmatprep.subr.mxu0 0.0
    %904 = vmatpush1.msra.mxu0 0.0
    %905 = vmatprep.mubr.f32.mxu0 0.0
    %906 = vmatmul.mubr.f32.gmra.mrb[0].mxu0 %v749
    %v907 = vpop.f32.mrb[0].mxu0
    %v908 = vadd.f32 %v411, %v907
    %v909 = vpop.f32.mrb[0].mxu0
    %910 = vdwg.mxu0
    %v911 = vmul.f32 %v833, %v908
    %v912 = vadd.f32 %v755, %v911
    %v913 = vtanh.pop %v912
    %v914 = vsub.f32 1.0, %v840
    %v915 = vmul.f32 %v914, %v913
    %v916 = vmul.f32 %v840, %v749
    %v917 = vadd.f32 %v915, %v916
    %s918 = smul.u32 3, 3
    %s919 = smul.addr %s918, 8
    %s920 = scalar_lea.vmem [#allocation2], %s919
    %v921 = vld [vmem:[%s920] sm:$0xff]
    %v922 = vld [vmem:[%s920 + $0x8] sm:$0xff]
    %v923 = vld [vmem:[%s920 + $0x10] sm:$0xff]
    %924 = vmatprep.subr.mxu0 %v359
    %925 = vmatpush1.msra.mxu0 %v358
    %926 = vmatprep.subr.mxu0 %v361
    %927 = vmatpush1.msra.mxu0 %v360
    %928 = vmatprep.subr.mxu0 %v363
    %929 = vmatpush1.msra.mxu0 %v362
    %930 = vmatprep.subr.mxu0 %v365
    %931 = vmatpush1.msra.mxu0 %v364
    %932 = vmatprep.subr.mxu0 %v367
    %933 = vmatpush1.msra.mxu0 %v366
    %934 = vmatprep.subr.mxu0 %v369
    %935 = vmatpush1.msra.mxu0 %v368
    %936 = vmatprep.subr.mxu0 %v371
    %937 = vmatpush1.msra.mxu0 %v370
    %938 = vmatprep.subr.mxu0 %v373
    %939 = vmatpush1.msra.mxu0 %v372
    %940 = vmatprep.subr.mxu0 %v375
    %941 = vmatpush1.msra.mxu0 %v374
    %942 = vmatprep.subr.mxu0 %v377
    %943 = vmatpush1.msra.mxu0 %v376
    %944 = vmatprep.subr.mxu0 %v379
    %945 = vmatpush1.msra.mxu0 %v378
    %946 = vmatprep.subr.mxu0 %v381
    %947 = vmatpush1.msra.mxu0 %v380
    %948 = vmatprep.subr.mxu0 %v383
    %949 = vmatpush1.msra.mxu0 %v382
    %950 = vmatprep.subr.mxu0 %v385
    %951 = vmatpush1.msra.mxu0 %v384
    %952 = vmatprep.subr.mxu0 %v387
    %953 = vmatpush1.msra.mxu0 %v386
    %954 = vmatprep.subr.mxu0 %v389
    %955 = vmatpush1.msra.mxu0 %v388
    %956 = vmatprep.subr.mxu0 0.0
    %957 = vmatpush1.msra.mxu0 0.0
    %958 = vmatprep.subr.mxu0 0.0
    %959 = vmatpush1.msra.mxu0 0.0
    %960 = vmatprep.subr.mxu0 0.0
    %961 = vmatpush1.msra.mxu0 0.0
    %962 = vmatprep.subr.mxu0 0.0
    %963 = vmatpush1.msra.mxu0 0.0
    %964 = vmatprep.subr.mxu0 0.0
    %965 = vmatpush1.msra.mxu0 0.0
    %966 = vmatprep.subr.mxu0 0.0
    %967 = vmatpush1.msra.mxu0 0.0
    %968 = vmatprep.subr.mxu0 0.0
    %969 = vmatpush1.msra.mxu0 0.0
    %970 = vmatprep.subr.mxu0 0.0
    %971 = vmatpush1.msra.mxu0 0.0
    %972 = vmatprep.subr.mxu0 0.0
    %973 = vmatpush1.msra.mxu0 0.0
    %974 = vmatprep.subr.mxu0 0.0
    %975 = vmatpush1.msra.mxu0 0.0
    %976 = vmatprep.subr.mxu0 0.0
    %977 = vmatpush1.msra.mxu0 0.0
    %978 = vmatprep.subr.mxu0 0.0
    %979 = vmatpush1.msra.mxu0 0.0
    %980 = vmatprep.subr.mxu0 0.0
    %981 = vmatpush1.msra.mxu0 0.0
    %982 = vmatprep.subr.mxu0 0.0
    %983 = vmatpush1.msra.mxu0 0.0
    %984 = vmatprep.subr.mxu0 0.0
    %985 = vmatpush1.msra.mxu0 0.0
    %986 = vmatprep.subr.mxu0 0.0
    %987 = vmatpush1.msra.mxu0 0.0
    %988 = vmatprep.mubr.f32.mxu0 0.0
    %989 = vmatmul.mubr.f32.gmra.mrb[0].mxu0 %v917
    %v990 = vpop.f32.mrb[0].mxu0
    %v991 = vadd.f32 0.0, %v990
    %v992 = vpop.f32.mrb[0].mxu0
    %v993 = vadd.f32 0.0, %v992
    %994 = vdwg.mxu0
    %v995 = vadd.f32 %v921, %v991
    %v996 = vxor.u32 %v995, 2147483648
    %v997 = vmul.f32 %v996, 1.442695
    %v998 = vpow.pop %v997
    %v999 = vadd.f32 %v998, 1.0
    %v1000 = vrcp.pop %v999
    %v1001 = vmul.f32 1.0, %v1000
    %v1002 = vadd.f32 %v922, %v993
    %v1003 = vxor.u32 %v1002, 2147483648
    %v1004 = vmul.f32 %v1003, 1.442695
    %v1005 = vpow.pop %v1004
    %v1006 = vadd.f32 %v1005, 1.0
    %v1007 = vrcp.pop %v1006
    %v1008 = vmul.f32 1.0, %v1007
    %1009 = vmatprep.subr.mxu0 0.0
    %1010 = vmatpush1.msra.mxu0 %v390
    %1011 = vmatprep.subr.mxu0 0.0
    %1012 = vmatpush1.msra.mxu0 %v391
    %1013 = vmatprep.subr.mxu0 0.0
    %1014 = vmatpush1.msra.mxu0 %v392
    %1015 = vmatprep.subr.mxu0 0.0
    %1016 = vmatpush1.msra.mxu0 %v393
    %1017 = vmatprep.subr.mxu0 0.0
    %1018 = vmatpush1.msra.mxu0 %v394
    %1019 = vmatprep.subr.mxu0 0.0
    %1020 = vmatpush1.msra.mxu0 %v395
    %1021 = vmatprep.subr.mxu0 0.0
    %1022 = vmatpush1.msra.mxu0 %v396
    %1023 = vmatprep.subr.mxu0 0.0
    %1024 = vmatpush1.msra.mxu0 %v397
    %1025 = vmatprep.subr.mxu0 0.0
    %1026 = vmatpush1.msra.mxu0 %v398
    %1027 = vmatprep.subr.mxu0 0.0
    %1028 = vmatpush1.msra.mxu0 %v399
    %1029 = vmatprep.subr.mxu0 0.0
    %1030 = vmatpush1.msra.mxu0 %v400
    %1031 = vmatprep.subr.mxu0 0.0
    %1032 = vmatpush1.msra.mxu0 %v401
    %1033 = vmatprep.subr.mxu0 0.0
    %1034 = vmatpush1.msra.mxu0 %v402
    %1035 = vmatprep.subr.mxu0 0.0
    %1036 = vmatpush1.msra.mxu0 %v403
    %1037 = vmatprep.subr.mxu0 0.0
    %1038 = vmatpush1.msra.mxu0 %v404
    %1039 = vmatprep.subr.mxu0 0.0
    %1040 = vmatpush1.msra.mxu0 %v405
    %1041 = vmatprep.subr.mxu0 0.0
    %1042 = vmatpush1.msra.mxu0 0.0
    %1043 = vmatprep.subr.mxu0 0.0
    %1044 = vmatpush1.msra.mxu0 0.0
    %1045 = vmatprep.subr.mxu0 0.0
    %1046 = vmatpush1.msra.mxu0 0.0
    %1047 = vmatprep.subr.mxu0 0.0
    %1048 = vmatpush1.msra.mxu0 0.0
    %1049 = vmatprep.subr.mxu0 0.0
    %1050 = vmatpush1.msra.mxu0 0.0
    %1051 = vmatprep.subr.mxu0 0.0
    %1052 = vmatpush1.msra.mxu0 0.0
    %1053 = vmatprep.subr.mxu0 0.0
    %1054 = vmatpush1.msra.mxu0 0.0
    %1055 = vmatprep.subr.mxu0 0.0
    %1056 = vmatpush1.msra.mxu0 0.0
    %1057 = vmatprep.subr.mxu0 0.0
    %1058 = vmatpush1.msra.mxu0 0.0
    %1059 = vmatprep.subr.mxu0 0.0
    %1060 = vmatpush1.msra.mxu0 0.0
    %1061 = vmatprep.subr.mxu0 0.0
    %1062 = vmatpush1.msra.mxu0 0.0
    %1063 = vmatprep.subr.mxu0 0.0
    %1064 = vmatpush1.msra.mxu0 0.0
    %1065 = vmatprep.subr.mxu0 0.0
    %1066 = vmatpush1.msra.mxu0 0.0
    %1067 = vmatprep.subr.mxu0 0.0
    %1068 = vmatpush1.msra.mxu0 0.0
    %1069 = vmatprep.subr.mxu0 0.0
    %1070 = vmatpush1.msra.mxu0 0.0
    %1071 = vmatprep.subr.mxu0 0.0
    %1072 = vmatpush1.msra.mxu0 0.0
    %1073 = vmatprep.mubr.f32.mxu0 0.0
    %1074 = vmatmul.mubr.f32.gmra.mrb[0].mxu0 %v917
    %v1075 = vpop.f32.mrb[0].mxu0
    %v1076 = vadd.f32 %v411, %v1075
    %v1077 = vpop.f32.mrb[0].mxu0
    %1078 = vdwg.mxu0
    %v1079 = vmul.f32 %v1001, %v1076
    %v1080 = vadd.f32 %v923, %v1079
    %v1081 = vtanh.pop %v1080
    %v1082 = vsub.f32 1.0, %v1008
    %v1083 = vmul.f32 %v1082, %v1081
    %v1084 = vmul.f32 %v1008, %v917
    %v1085 = vadd.f32 %v1083, %v1084
    %s1086 = smul.u32 4, 3
    %s1087 = smul.addr %s1086, 8
    %s1088 = scalar_lea.vmem [#allocation2], %s1087
    %v1089 = vld [vmem:[%s1088] sm:$0xff]
    %v1090 = vld [vmem:[%s1088 + $0x8] sm:$0xff]
    %v1091 = vld [vmem:[%s1088 + $0x10] sm:$0xff]
    %1092 = vmatprep.subr.mxu0 %v359
    %1093 = vmatpush1.msra.mxu0 %v358
    %1094 = vmatprep.subr.mxu0 %v361
    %1095 = vmatpush1.msra.mxu0 %v360
    %1096 = vmatprep.subr.mxu0 %v363
    %1097 = vmatpush1.msra.mxu0 %v362
    %1098 = vmatprep.subr.mxu0 %v365
    %1099 = vmatpush1.msra.mxu0 %v364
    %1100 = vmatprep.subr.mxu0 %v367
    %1101 = vmatpush1.msra.mxu0 %v366
    %1102 = vmatprep.subr.mxu0 %v369
    %1103 = vmatpush1.msra.mxu0 %v368
    %1104 = vmatprep.subr.mxu0 %v371
    %1105 = vmatpush1.msra.mxu0 %v370
    %1106 = vmatprep.subr.mxu0 %v373
    %1107 = vmatpush1.msra.mxu0 %v372
    %1108 = vmatprep.subr.mxu0 %v375
    %1109 = vmatpush1.msra.mxu0 %v374
    %1110 = vmatprep.subr.mxu0 %v377
    %1111 = vmatpush1.msra.mxu0 %v376
    %1112 = vmatprep.subr.mxu0 %v379
    %1113 = vmatpush1.msra.mxu0 %v378
    %1114 = vmatprep.subr.mxu0 %v381
    %1115 = vmatpush1.msra.mxu0 %v380
    %1116 = vmatprep.subr.mxu0 %v383
    %1117 = vmatpush1.msra.mxu0 %v382
    %1118 = vmatprep.subr.mxu0 %v385
    %1119 = vmatpush1.msra.mxu0 %v384
    %1120 = vmatprep.subr.mxu0 %v387
    %1121 = vmatpush1.msra.mxu0 %v386
    %1122 = vmatprep.subr.mxu0 %v389
    %1123 = vmatpush1.msra.mxu0 %v388
    %1124 = vmatprep.subr.mxu0 0.0
    %1125 = vmatpush1.msra.mxu0 0.0
    %1126 = vmatprep.subr.mxu0 0.0
    %1127 = vmatpush1.msra.mxu0 0.0
    %1128 = vmatprep.subr.mxu0 0.0
    %1129 = vmatpush1.msra.mxu0 0.0
    %1130 = vmatprep.subr.mxu0 0.0
    %1131 = vmatpush1.msra.mxu0 0.0
    %1132 = vmatprep.subr.mxu0 0.0
    %1133 = vmatpush1.msra.mxu0 0.0
    %1134 = vmatprep.subr.mxu0 0.0
    %1135 = vmatpush1.msra.mxu0 0.0
    %1136 = vmatprep.subr.mxu0 0.0
    %1137 = vmatpush1.msra.mxu0 0.0
    %1138 = vmatprep.subr.mxu0 0.0
    %1139 = vmatpush1.msra.mxu0 0.0
    %1140 = vmatprep.subr.mxu0 0.0
    %1141 = vmatpush1.msra.mxu0 0.0
    %1142 = vmatprep.subr.mxu0 0.0
    %1143 = vmatpush1.msra.mxu0 0.0
    %1144 = vmatprep.subr.mxu0 0.0
    %1145 = vmatpush1.msra.mxu0 0.0
    %1146 = vmatprep.subr.mxu0 0.0
    %1147 = vmatpush1.msra.mxu0 0.0
    %1148 = vmatprep.subr.mxu0 0.0
    %1149 = vmatpush1.msra.mxu0 0.0
    %1150 = vmatprep.subr.mxu0 0.0
    %1151 = vmatpush1.msra.mxu0 0.0
    %1152 = vmatprep.subr.mxu0 0.0
    %1153 = vmatpush1.msra.mxu0 0.0
    %1154 = vmatprep.subr.mxu0 0.0
    %1155 = vmatpush1.msra.mxu0 0.0
    %1156 = vmatprep.mubr.f32.mxu0 0.0
    %1157 = vmatmul.mubr.f32.gmra.mrb[0].mxu0 %v1085
    %v1158 = vpop.f32.mrb[0].mxu0
    %v1159 = vadd.f32 0.0, %v1158
    %v1160 = vpop.f32.mrb[0].mxu0
    %v1161 = vadd.f32 0.0, %v1160
    %1162 = vdwg.mxu0
    %v1163 = vadd.f32 %v1089, %v1159
    %v1164 = vxor.u32 %v1163, 2147483648
    %v1165 = vmul.f32 %v1164, 1.442695
    %v1166 = vpow.pop %v1165
    %v1167 = vadd.f32 %v1166, 1.0
    %v1168 = vrcp.pop %v1167
    %v1169 = vmul.f32 1.0, %v1168
    %v1170 = vadd.f32 %v1090, %v1161
    %v1171 = vxor.u32 %v1170, 2147483648
    %v1172 = vmul.f32 %v1171, 1.442695
    %v1173 = vpow.pop %v1172
    %v1174 = vadd.f32 %v1173, 1.0
    %v1175 = vrcp.pop %v1174
    %v1176 = vmul.f32 1.0, %v1175
    %1177 = vmatprep.subr.mxu0 0.0
    %1178 = vmatpush1.msra.mxu0 %v390
    %1179 = vmatprep.subr.mxu0 0.0
    %1180 = vmatpush1.msra.mxu0 %v391
    %1181 = vmatprep.subr.mxu0 0.0
    %1182 = vmatpush1.msra.mxu0 %v392
    %1183 = vmatprep.subr.mxu0 0.0
    %1184 = vmatpush1.msra.mxu0 %v393
    %1185 = vmatprep.subr.mxu0 0.0
    %1186 = vmatpush1.msra.mxu0 %v394
    %1187 = vmatprep.subr.mxu0 0.0
    %1188 = vmatpush1.msra.mxu0 %v395
    %1189 = vmatprep.subr.mxu0 0.0
    %1190 = vmatpush1.msra.mxu0 %v396
    %1191 = vmatprep.subr.mxu0 0.0
    %1192 = vmatpush1.msra.mxu0 %v397
    %1193 = vmatprep.subr.mxu0 0.0
    %1194 = vmatpush1.msra.mxu0 %v398
    %1195 = vmatprep.subr.mxu0 0.0
    %1196 = vmatpush1.msra.mxu0 %v399
    %1197 = vmatprep.subr.mxu0 0.0
    %1198 = vmatpush1.msra.mxu0 %v400
    %1199 = vmatprep.subr.mxu0 0.0
    %1200 = vmatpush1.msra.mxu0 %v401
    %1201 = vmatprep.subr.mxu0 0.0
    %1202 = vmatpush1.msra.mxu0 %v402
    %1203 = vmatprep.subr.mxu0 0.0
    %1204 = vmatpush1.msra.mxu0 %v403
    %1205 = vmatprep.subr.mxu0 0.0
    %1206 = vmatpush1.msra.mxu0 %v404
    %1207 = vmatprep.subr.mxu0 0.0
    %1208 = vmatpush1.msra.mxu0 %v405
    %1209 = vmatprep.subr.mxu0 0.0
    %1210 = vmatpush1.msra.mxu0 0.0
    %1211 = vmatprep.subr.mxu0 0.0
    %1212 = vmatpush1.msra.mxu0 0.0
    %1213 = vmatprep.subr.mxu0 0.0
    %1214 = vmatpush1.msra.mxu0 0.0
    %1215 = vmatprep.subr.mxu0 0.0
    %1216 = vmatpush1.msra.mxu0 0.0
    %1217 = vmatprep.subr.mxu0 0.0
    %1218 = vmatpush1.msra.mxu0 0.0
    %1219 = vmatprep.subr.mxu0 0.0
    %1220 = vmatpush1.msra.mxu0 0.0
    %1221 = vmatprep.subr.mxu0 0.0
    %1222 = vmatpush1.msra.mxu0 0.0
    %1223 = vmatprep.subr.mxu0 0.0
    %1224 = vmatpush1.msra.mxu0 0.0
    %1225 = vmatprep.subr.mxu0 0.0
    %1226 = vmatpush1.msra.mxu0 0.0
    %1227 = vmatprep.subr.mxu0 0.0
    %1228 = vmatpush1.msra.mxu0 0.0
    %1229 = vmatprep.subr.mxu0 0.0
    %1230 = vmatpush1.msra.mxu0 0.0
    %1231 = vmatprep.subr.mxu0 0.0
    %1232 = vmatpush1.msra.mxu0 0.0
    %1233 = vmatprep.subr.mxu0 0.0
    %1234 = vmatpush1.msra.mxu0 0.0
    %1235 = vmatprep.subr.mxu0 0.0
    %1236 = vmatpush1.msra.mxu0 0.0
    %1237 = vmatprep.subr.mxu0 0.0
    %1238 = vmatpush1.msra.mxu0 0.0
    %1239 = vmatprep.subr.mxu0 0.0
    %1240 = vmatpush1.msra.mxu0 0.0
    %1241 = vmatprep.mubr.f32.mxu0 0.0
    %1242 = vmatmul.mubr.f32.gmra.mrb[0].mxu0 %v1085
    %v1243 = vpop.f32.mrb[0].mxu0
    %v1244 = vadd.f32 %v411, %v1243
    %v1245 = vpop.f32.mrb[0].mxu0
    %1246 = vdwg.mxu0
    %v1247 = vmul.f32 %v1169, %v1244
    %v1248 = vadd.f32 %v1091, %v1247
    %v1249 = vtanh.pop %v1248
    %v1250 = vsub.f32 1.0, %v1176
    %v1251 = vmul.f32 %v1250, %v1249
    %v1252 = vmul.f32 %v1176, %v1085
    %v1253 = vadd.f32 %v1251, %v1252
    %s1254 = smul.u32 5, 3
    %s1255 = smul.addr %s1254, 8
    %s1256 = scalar_lea.vmem [#allocation2], %s1255
    %v1257 = vld [vmem:[%s1256] sm:$0xff]
    %v1258 = vld [vmem:[%s1256 + $0x8] sm:$0xff]
    %v1259 = vld [vmem:[%s1256 + $0x10] sm:$0xff]
    %1260 = vmatprep.subr.mxu0 %v359
    %1261 = vmatpush1.msra.mxu0 %v358
    %1262 = vmatprep.subr.mxu0 %v361
    %1263 = vmatpush1.msra.mxu0 %v360
    %1264 = vmatprep.subr.mxu0 %v363
    %1265 = vmatpush1.msra.mxu0 %v362
    %1266 = vmatprep.subr.mxu0 %v365
    %1267 = vmatpush1.msra.mxu0 %v364
    %1268 = vmatprep.subr.mxu0 %v367
    %1269 = vmatpush1.msra.mxu0 %v366
    %1270 = vmatprep.subr.mxu0 %v369
    %1271 = vmatpush1.msra.mxu0 %v368
    %1272 = vmatprep.subr.mxu0 %v371
    %1273 = vmatpush1.msra.mxu0 %v370
    %1274 = vmatprep.subr.mxu0 %v373
    %1275 = vmatpush1.msra.mxu0 %v372
    %1276 = vmatprep.subr.mxu0 %v375
    %1277 = vmatpush1.msra.mxu0 %v374
    %1278 = vmatprep.subr.mxu0 %v377
    %1279 = vmatpush1.msra.mxu0 %v376
    %1280 = vmatprep.subr.mxu0 %v379
    %1281 = vmatpush1.msra.mxu0 %v378
    %1282 = vmatprep.subr.mxu0 %v381
    %1283 = vmatpush1.msra.mxu0 %v380
    %1284 = vmatprep.subr.mxu0 %v383
    %1285 = vmatpush1.msra.mxu0 %v382
    %1286 = vmatprep.subr.mxu0 %v385
    %1287 = vmatpush1.msra.mxu0 %v384
    %1288 = vmatprep.subr.mxu0 %v387
    %1289 = vmatpush1.msra.mxu0 %v386
    %1290 = vmatprep.subr.mxu0 %v389
    %1291 = vmatpush1.msra.mxu0 %v388
    %1292 = vmatprep.subr.mxu0 0.0
    %1293 = vmatpush1.msra.mxu0 0.0
    %1294 = vmatprep.subr.mxu0 0.0
    %1295 = vmatpush1.msra.mxu0 0.0
    %1296 = vmatprep.subr.mxu0 0.0
    %1297 = vmatpush1.msra.mxu0 0.0
    %1298 = vmatprep.subr.mxu0 0.0
    %1299 = vmatpush1.msra.mxu0 0.0
    %1300 = vmatprep.subr.mxu0 0.0
    %1301 = vmatpush1.msra.mxu0 0.0
    %1302 = vmatprep.subr.mxu0 0.0
    %1303 = vmatpush1.msra.mxu0 0.0
    %1304 = vmatprep.subr.mxu0 0.0
    %1305 = vmatpush1.msra.mxu0 0.0
    %1306 = vmatprep.subr.mxu0 0.0
    %1307 = vmatpush1.msra.mxu0 0.0
    %1308 = vmatprep.subr.mxu0 0.0
    %1309 = vmatpush1.msra.mxu0 0.0
    %1310 = vmatprep.subr.mxu0 0.0
    %1311 = vmatpush1.msra.mxu0 0.0
    %1312 = vmatprep.subr.mxu0 0.0
    %1313 = vmatpush1.msra.mxu0 0.0
    %1314 = vmatprep.subr.mxu0 0.0
    %1315 = vmatpush1.msra.mxu0 0.0
    %1316 = vmatprep.subr.mxu0 0.0
    %1317 = vmatpush1.msra.mxu0 0.0
    %1318 = vmatprep.subr.mxu0 0.0
    %1319 = vmatpush1.msra.mxu0 0.0
    %1320 = vmatprep.subr.mxu0 0.0
    %1321 = vmatpush1.msra.mxu0 0.0
    %1322 = vmatprep.subr.mxu0 0.0
    %1323 = vmatpush1.msra.mxu0 0.0
    %1324 = vmatprep.mubr.f32.mxu0 0.0
    %1325 = vmatmul.mubr.f32.gmra.mrb[0].mxu0 %v1253
    %v1326 = vpop.f32.mrb[0].mxu0
    %v1327 = vadd.f32 0.0, %v1326
    %v1328 = vpop.f32.mrb[0].mxu0
    %v1329 = vadd.f32 0.0, %v1328
    %1330 = vdwg.mxu0
    %v1331 = vadd.f32 %v1257, %v1327
    %v1332 = vxor.u32 %v1331, 2147483648
    %v1333 = vmul.f32 %v1332, 1.442695
    %v1334 = vpow.pop %v1333
    %v1335 = vadd.f32 %v1334, 1.0
    %v1336 = vrcp.pop %v1335
    %v1337 = vmul.f32 1.0, %v1336
    %v1338 = vadd.f32 %v1258, %v1329
    %v1339 = vxor.u32 %v1338, 2147483648
    %v1340 = vmul.f32 %v1339, 1.442695
    %v1341 = vpow.pop %v1340
    %v1342 = vadd.f32 %v1341, 1.0
    %v1343 = vrcp.pop %v1342
    %v1344 = vmul.f32 1.0, %v1343
    %1345 = vmatprep.subr.mxu0 0.0
    %1346 = vmatpush1.msra.mxu0 %v390
    %1347 = vmatprep.subr.mxu0 0.0
    %1348 = vmatpush1.msra.mxu0 %v391
    %1349 = vmatprep.subr.mxu0 0.0
    %1350 = vmatpush1.msra.mxu0 %v392
    %1351 = vmatprep.subr.mxu0 0.0
    %1352 = vmatpush1.msra.mxu0 %v393
    %1353 = vmatprep.subr.mxu0 0.0
    %1354 = vmatpush1.msra.mxu0 %v394
    %1355 = vmatprep.subr.mxu0 0.0
    %1356 = vmatpush1.msra.mxu0 %v395
    %1357 = vmatprep.subr.mxu0 0.0
    %1358 = vmatpush1.msra.mxu0 %v396
    %1359 = vmatprep.subr.mxu0 0.0
    %1360 = vmatpush1.msra.mxu0 %v397
    %1361 = vmatprep.subr.mxu0 0.0
    %1362 = vmatpush1.msra.mxu0 %v398
    %1363 = vmatprep.subr.mxu0 0.0
    %1364 = vmatpush1.msra.mxu0 %v399
    %1365 = vmatprep.subr.mxu0 0.0
    %1366 = vmatpush1.msra.mxu0 %v400
    %1367 = vmatprep.subr.mxu0 0.0
    %1368 = vmatpush1.msra.mxu0 %v401
    %1369 = vmatprep.subr.mxu0 0.0
    %1370 = vmatpush1.msra.mxu0 %v402
    %1371 = vmatprep.subr.mxu0 0.0
    %1372 = vmatpush1.msra.mxu0 %v403
    %1373 = vmatprep.subr.mxu0 0.0
    %1374 = vmatpush1.msra.mxu0 %v404
    %1375 = vmatprep.subr.mxu0 0.0
    %1376 = vmatpush1.msra.mxu0 %v405
    %1377 = vmatprep.subr.mxu0 0.0
    %1378 = vmatpush1.msra.mxu0 0.0
    %1379 = vmatprep.subr.mxu0 0.0
    %1380 = vmatpush1.msra.mxu0 0.0
    %1381 = vmatprep.subr.mxu0 0.0
    %1382 = vmatpush1.msra.mxu0 0.0
    %1383 = vmatprep.subr.mxu0 0.0
    %1384 = vmatpush1.msra.mxu0 0.0
    %1385 = vmatprep.subr.mxu0 0.0
    %1386 = vmatpush1.msra.mxu0 0.0
    %1387 = vmatprep.subr.mxu0 0.0
    %1388 = vmatpush1.msra.mxu0 0.0
    %1389 = vmatprep.subr.mxu0 0.0
    %1390 = vmatpush1.msra.mxu0 0.0
    %1391 = vmatprep.subr.mxu0 0.0
    %1392 = vmatpush1.msra.mxu0 0.0
    %1393 = vmatprep.subr.mxu0 0.0
    %1394 = vmatpush1.msra.mxu0 0.0
    %1395 = vmatprep.subr.mxu0 0.0
    %1396 = vmatpush1.msra.mxu0 0.0
    %1397 = vmatprep.subr.mxu0 0.0
    %1398 = vmatpush1.msra.mxu0 0.0
    %1399 = vmatprep.subr.mxu0 0.0
    %1400 = vmatpush1.msra.mxu0 0.0
    %1401 = vmatprep.subr.mxu0 0.0
    %1402 = vmatpush1.msra.mxu0 0.0
    %1403 = vmatprep.subr.mxu0 0.0
    %1404 = vmatpush1.msra.mxu0 0.0
    %1405 = vmatprep.subr.mxu0 0.0
    %1406 = vmatpush1.msra.mxu0 0.0
    %1407 = vmatprep.subr.mxu0 0.0
    %1408 = vmatpush1.msra.mxu0 0.0
    %1409 = vmatprep.mubr.f32.mxu0 0.0
    %1410 = vmatmul.mubr.f32.gmra.mrb[0].mxu0 %v1253
    %v1411 = vpop.f32.mrb[0].mxu0
    %v1412 = vadd.f32 %v411, %v1411
    %v1413 = vpop.f32.mrb[0].mxu0
    %1414 = vdwg.mxu0
    %v1415 = vmul.f32 %v1337, %v1412
    %v1416 = vadd.f32 %v1259, %v1415
    %v1417 = vtanh.pop %v1416
    %v1418 = vsub.f32 1.0, %v1344
    %v1419 = vmul.f32 %v1418, %v1417
    %v1420 = vmul.f32 %v1344, %v1253
    %v1421 = vadd.f32 %v1419, %v1420
    %s1422 = smul.u32 6, 3
    %s1423 = smul.addr %s1422, 8
    %s1424 = scalar_lea.vmem [#allocation2], %s1423
    %v1425 = vld [vmem:[%s1424] sm:$0xff]
    %v1426 = vld [vmem:[%s1424 + $0x8] sm:$0xff]
    %v1427 = vld [vmem:[%s1424 + $0x10] sm:$0xff]
    %1428 = vmatprep.subr.mxu0 %v359
    %1429 = vmatpush1.msra.mxu0 %v358
    %1430 = vmatprep.subr.mxu0 %v361
    %1431 = vmatpush1.msra.mxu0 %v360
    %1432 = vmatprep.subr.mxu0 %v363
    %1433 = vmatpush1.msra.mxu0 %v362
    %1434 = vmatprep.subr.mxu0 %v365
    %1435 = vmatpush1.msra.mxu0 %v364
    %1436 = vmatprep.subr.mxu0 %v367
    %1437 = vmatpush1.msra.mxu0 %v366
    %1438 = vmatprep.subr.mxu0 %v369
    %1439 = vmatpush1.msra.mxu0 %v368
    %1440 = vmatprep.subr.mxu0 %v371
    %1441 = vmatpush1.msra.mxu0 %v370
    %1442 = vmatprep.subr.mxu0 %v373
    %1443 = vmatpush1.msra.mxu0 %v372
    %1444 = vmatprep.subr.mxu0 %v375
    %1445 = vmatpush1.msra.mxu0 %v374
    %1446 = vmatprep.subr.mxu0 %v377
    %1447 = vmatpush1.msra.mxu0 %v376
    %1448 = vmatprep.subr.mxu0 %v379
    %1449 = vmatpush1.msra.mxu0 %v378
    %1450 = vmatprep.subr.mxu0 %v381
    %1451 = vmatpush1.msra.mxu0 %v380
    %1452 = vmatprep.subr.mxu0 %v383
    %1453 = vmatpush1.msra.mxu0 %v382
    %1454 = vmatprep.subr.mxu0 %v385
    %1455 = vmatpush1.msra.mxu0 %v384
    %1456 = vmatprep.subr.mxu0 %v387
    %1457 = vmatpush1.msra.mxu0 %v386
    %1458 = vmatprep.subr.mxu0 %v389
    %1459 = vmatpush1.msra.mxu0 %v388
    %1460 = vmatprep.subr.mxu0 0.0
    %1461 = vmatpush1.msra.mxu0 0.0
    %1462 = vmatprep.subr.mxu0 0.0
    %1463 = vmatpush1.msra.mxu0 0.0
    %1464 = vmatprep.subr.mxu0 0.0
    %1465 = vmatpush1.msra.mxu0 0.0
    %1466 = vmatprep.subr.mxu0 0.0
    %1467 = vmatpush1.msra.mxu0 0.0
    %1468 = vmatprep.subr.mxu0 0.0
    %1469 = vmatpush1.msra.mxu0 0.0
    %1470 = vmatprep.subr.mxu0 0.0
    %1471 = vmatpush1.msra.mxu0 0.0
    %1472 = vmatprep.subr.mxu0 0.0
    %1473 = vmatpush1.msra.mxu0 0.0
    %1474 = vmatprep.subr.mxu0 0.0
    %1475 = vmatpush1.msra.mxu0 0.0
    %1476 = vmatprep.subr.mxu0 0.0
    %1477 = vmatpush1.msra.mxu0 0.0
    %1478 = vmatprep.subr.mxu0 0.0
    %1479 = vmatpush1.msra.mxu0 0.0
    %1480 = vmatprep.subr.mxu0 0.0
    %1481 = vmatpush1.msra.mxu0 0.0
    %1482 = vmatprep.subr.mxu0 0.0
    %1483 = vmatpush1.msra.mxu0 0.0
    %1484 = vmatprep.subr.mxu0 0.0
    %1485 = vmatpush1.msra.mxu0 0.0
    %1486 = vmatprep.subr.mxu0 0.0
    %1487 = vmatpush1.msra.mxu0 0.0
    %1488 = vmatprep.subr.mxu0 0.0
    %1489 = vmatpush1.msra.mxu0 0.0
    %1490 = vmatprep.subr.mxu0 0.0
    %1491 = vmatpush1.msra.mxu0 0.0
    %1492 = vmatprep.mubr.f32.mxu0 0.0
    %1493 = vmatmul.mubr.f32.gmra.mrb[0].mxu0 %v1421
    %v1494 = vpop.f32.mrb[0].mxu0
    %v1495 = vadd.f32 0.0, %v1494
    %v1496 = vpop.f32.mrb[0].mxu0
    %v1497 = vadd.f32 0.0, %v1496
    %1498 = vdwg.mxu0
    %v1499 = vadd.f32 %v1425, %v1495
    %v1500 = vxor.u32 %v1499, 2147483648
    %v1501 = vmul.f32 %v1500, 1.442695
    %v1502 = vpow.pop %v1501
    %v1503 = vadd.f32 %v1502, 1.0
    %v1504 = vrcp.pop %v1503
    %v1505 = vmul.f32 1.0, %v1504
    %v1506 = vadd.f32 %v1426, %v1497
    %v1507 = vxor.u32 %v1506, 2147483648
    %v1508 = vmul.f32 %v1507, 1.442695
    %v1509 = vpow.pop %v1508
    %v1510 = vadd.f32 %v1509, 1.0
    %v1511 = vrcp.pop %v1510
    %v1512 = vmul.f32 1.0, %v1511
    %1513 = vmatprep.subr.mxu0 0.0
    %1514 = vmatpush1.msra.mxu0 %v390
    %1515 = vmatprep.subr.mxu0 0.0
    %1516 = vmatpush1.msra.mxu0 %v391
    %1517 = vmatprep.subr.mxu0 0.0
    %1518 = vmatpush1.msra.mxu0 %v392
    %1519 = vmatprep.subr.mxu0 0.0
    %1520 = vmatpush1.msra.mxu0 %v393
    %1521 = vmatprep.subr.mxu0 0.0
    %1522 = vmatpush1.msra.mxu0 %v394
    %1523 = vmatprep.subr.mxu0 0.0
    %1524 = vmatpush1.msra.mxu0 %v395
    %1525 = vmatprep.subr.mxu0 0.0
    %1526 = vmatpush1.msra.mxu0 %v396
    %1527 = vmatprep.subr.mxu0 0.0
    %1528 = vmatpush1.msra.mxu0 %v397
    %1529 = vmatprep.subr.mxu0 0.0
    %1530 = vmatpush1.msra.mxu0 %v398
    %1531 = vmatprep.subr.mxu0 0.0
    %1532 = vmatpush1.msra.mxu0 %v399
    %1533 = vmatprep.subr.mxu0 0.0
    %1534 = vmatpush1.msra.mxu0 %v400
    %1535 = vmatprep.subr.mxu0 0.0
    %1536 = vmatpush1.msra.mxu0 %v401
    %1537 = vmatprep.subr.mxu0 0.0
    %1538 = vmatpush1.msra.mxu0 %v402
    %1539 = vmatprep.subr.mxu0 0.0
    %1540 = vmatpush1.msra.mxu0 %v403
    %1541 = vmatprep.subr.mxu0 0.0
    %1542 = vmatpush1.msra.mxu0 %v404
    %1543 = vmatprep.subr.mxu0 0.0
    %1544 = vmatpush1.msra.mxu0 %v405
    %1545 = vmatprep.subr.mxu0 0.0
    %1546 = vmatpush1.msra.mxu0 0.0
    %1547 = vmatprep.subr.mxu0 0.0
    %1548 = vmatpush1.msra.mxu0 0.0
    %1549 = vmatprep.subr.mxu0 0.0
    %1550 = vmatpush1.msra.mxu0 0.0
    %1551 = vmatprep.subr.mxu0 0.0
    %1552 = vmatpush1.msra.mxu0 0.0
    %1553 = vmatprep.subr.mxu0 0.0
    %1554 = vmatpush1.msra.mxu0 0.0
    %1555 = vmatprep.subr.mxu0 0.0
    %1556 = vmatpush1.msra.mxu0 0.0
    %1557 = vmatprep.subr.mxu0 0.0
    %1558 = vmatpush1.msra.mxu0 0.0
    %1559 = vmatprep.subr.mxu0 0.0
    %1560 = vmatpush1.msra.mxu0 0.0
    %1561 = vmatprep.subr.mxu0 0.0
    %1562 = vmatpush1.msra.mxu0 0.0
    %1563 = vmatprep.subr.mxu0 0.0
    %1564 = vmatpush1.msra.mxu0 0.0
    %1565 = vmatprep.subr.mxu0 0.0
    %1566 = vmatpush1.msra.mxu0 0.0
    %1567 = vmatprep.subr.mxu0 0.0
    %1568 = vmatpush1.msra.mxu0 0.0
    %1569 = vmatprep.subr.mxu0 0.0
    %1570 = vmatpush1.msra.mxu0 0.0
    %1571 = vmatprep.subr.mxu0 0.0
    %1572 = vmatpush1.msra.mxu0 0.0
    %1573 = vmatprep.subr.mxu0 0.0
    %1574 = vmatpush1.msra.mxu0 0.0
    %1575 = vmatprep.subr.mxu0 0.0
    %1576 = vmatpush1.msra.mxu0 0.0
    %1577 = vmatprep.mubr.f32.mxu0 0.0
    %1578 = vmatmul.mubr.f32.gmra.mrb[0].mxu0 %v1421
    %v1579 = vpop.f32.mrb[0].mxu0
    %v1580 = vadd.f32 %v411, %v1579
    %v1581 = vpop.f32.mrb[0].mxu0
    %1582 = vdwg.mxu0
    %v1583 = vmul.f32 %v1505, %v1580
    %v1584 = vadd.f32 %v1427, %v1583
    %v1585 = vtanh.pop %v1584
    %v1586 = vsub.f32 1.0, %v1512
    %v1587 = vmul.f32 %v1586, %v1585
    %v1588 = vmul.f32 %v1512, %v1421
    %v1589 = vadd.f32 %v1587, %v1588
    %s1590 = smul.u32 7, 3
    %s1591 = smul.addr %s1590, 8
    %s1592 = scalar_lea.vmem [#allocation2], %s1591
    %v1593 = vld [vmem:[%s1592] sm:$0xff]
    %v1594 = vld [vmem:[%s1592 + $0x8] sm:$0xff]
    %v1595 = vld [vmem:[%s1592 + $0x10] sm:$0xff]
    %1596 = vmatprep.subr.mxu0 %v359
    %1597 = vmatpush1.msra.mxu0 %v358
    %1598 = vmatprep.subr.mxu0 %v361
    %1599 = vmatpush1.msra.mxu0 %v360
    %1600 = vmatprep.subr.mxu0 %v363
    %1601 = vmatpush1.msra.mxu0 %v362
    %1602 = vmatprep.subr.mxu0 %v365
    %1603 = vmatpush1.msra.mxu0 %v364
    %1604 = vmatprep.subr.mxu0 %v367
    %1605 = vmatpush1.msra.mxu0 %v366
    %1606 = vmatprep.subr.mxu0 %v369
    %1607 = vmatpush1.msra.mxu0 %v368
    %1608 = vmatprep.subr.mxu0 %v371
    %1609 = vmatpush1.msra.mxu0 %v370
    %1610 = vmatprep.subr.mxu0 %v373
    %1611 = vmatpush1.msra.mxu0 %v372
    %1612 = vmatprep.subr.mxu0 %v375
    %1613 = vmatpush1.msra.mxu0 %v374
    %1614 = vmatprep.subr.mxu0 %v377
    %1615 = vmatpush1.msra.mxu0 %v376
    %1616 = vmatprep.subr.mxu0 %v379
    %1617 = vmatpush1.msra.mxu0 %v378
    %1618 = vmatprep.subr.mxu0 %v381
    %1619 = vmatpush1.msra.mxu0 %v380
    %1620 = vmatprep.subr.mxu0 %v383
    %1621 = vmatpush1.msra.mxu0 %v382
    %1622 = vmatprep.subr.mxu0 %v385
    %1623 = vmatpush1.msra.mxu0 %v384
    %1624 = vmatprep.subr.mxu0 %v387
    %1625 = vmatpush1.msra.mxu0 %v386
    %1626 = vmatprep.subr.mxu0 %v389
    %1627 = vmatpush1.msra.mxu0 %v388
    %1628 = vmatprep.subr.mxu0 0.0
    %1629 = vmatpush1.msra.mxu0 0.0
    %1630 = vmatprep.subr.mxu0 0.0
    %1631 = vmatpush1.msra.mxu0 0.0
    %1632 = vmatprep.subr.mxu0 0.0
    %1633 = vmatpush1.msra.mxu0 0.0
    %1634 = vmatprep.subr.mxu0 0.0
    %1635 = vmatpush1.msra.mxu0 0.0
    %1636 = vmatprep.subr.mxu0 0.0
    %1637 = vmatpush1.msra.mxu0 0.0
    %1638 = vmatprep.subr.mxu0 0.0
    %1639 = vmatpush1.msra.mxu0 0.0
    %1640 = vmatprep.subr.mxu0 0.0
    %1641 = vmatpush1.msra.mxu0 0.0
    %1642 = vmatprep.subr.mxu0 0.0
    %1643 = vmatpush1.msra.mxu0 0.0
    %1644 = vmatprep.subr.mxu0 0.0
    %1645 = vmatpush1.msra.mxu0 0.0
    %1646 = vmatprep.subr.mxu0 0.0
    %1647 = vmatpush1.msra.mxu0 0.0
    %1648 = vmatprep.subr.mxu0 0.0
    %1649 = vmatpush1.msra.mxu0 0.0
    %1650 = vmatprep.subr.mxu0 0.0
    %1651 = vmatpush1.msra.mxu0 0.0
    %1652 = vmatprep.subr.mxu0 0.0
    %1653 = vmatpush1.msra.mxu0 0.0
    %1654 = vmatprep.subr.mxu0 0.0
    %1655 = vmatpush1.msra.mxu0 0.0
    %1656 = vmatprep.subr.mxu0 0.0
    %1657 = vmatpush1.msra.mxu0 0.0
    %1658 = vmatprep.subr.mxu0 0.0
    %1659 = vmatpush1.msra.mxu0 0.0
    %1660 = vmatprep.mubr.f32.mxu0 0.0
    %1661 = vmatmul.mubr.f32.gmra.mrb[0].mxu0 %v1589
    %v1662 = vpop.f32.mrb[0].mxu0
    %v1663 = vadd.f32 0.0, %v1662
    %v1664 = vpop.f32.mrb[0].mxu0
    %v1665 = vadd.f32 0.0, %v1664
    %1666 = vdwg.mxu0
    %v1667 = vadd.f32 %v1593, %v1663
    %v1668 = vxor.u32 %v1667, 2147483648
    %v1669 = vmul.f32 %v1668, 1.442695
    %v1670 = vpow.pop %v1669
    %v1671 = vadd.f32 %v1670, 1.0
    %v1672 = vrcp.pop %v1671
    %v1673 = vmul.f32 1.0, %v1672
    %v1674 = vadd.f32 %v1594, %v1665
    %v1675 = vxor.u32 %v1674, 2147483648
    %v1676 = vmul.f32 %v1675, 1.442695
    %v1677 = vpow.pop %v1676
    %v1678 = vadd.f32 %v1677, 1.0
    %v1679 = vrcp.pop %v1678
    %v1680 = vmul.f32 1.0, %v1679
    %1681 = vmatprep.subr.mxu0 0.0
    %1682 = vmatpush1.msra.mxu0 %v390
    %1683 = vmatprep.subr.mxu0 0.0
    %1684 = vmatpush1.msra.mxu0 %v391
    %1685 = vmatprep.subr.mxu0 0.0
    %1686 = vmatpush1.msra.mxu0 %v392
    %1687 = vmatprep.subr.mxu0 0.0
    %1688 = vmatpush1.msra.mxu0 %v393
    %1689 = vmatprep.subr.mxu0 0.0
    %1690 = vmatpush1.msra.mxu0 %v394
    %1691 = vmatprep.subr.mxu0 0.0
    %1692 = vmatpush1.msra.mxu0 %v395
    %1693 = vmatprep.subr.mxu0 0.0
    %1694 = vmatpush1.msra.mxu0 %v396
    %1695 = vmatprep.subr.mxu0 0.0
    %1696 = vmatpush1.msra.mxu0 %v397
    %1697 = vmatprep.subr.mxu0 0.0
    %1698 = vmatpush1.msra.mxu0 %v398
    %1699 = vmatprep.subr.mxu0 0.0
    %1700 = vmatpush1.msra.mxu0 %v399
    %1701 = vmatprep.subr.mxu0 0.0
    %1702 = vmatpush1.msra.mxu0 %v400
    %1703 = vmatprep.subr.mxu0 0.0
    %1704 = vmatpush1.msra.mxu0 %v401
    %1705 = vmatprep.subr.mxu0 0.0
    %1706 = vmatpush1.msra.mxu0 %v402
    %1707 = vmatprep.subr.mxu0 0.0
    %1708 = vmatpush1.msra.mxu0 %v403
    %1709 = vmatprep.subr.mxu0 0.0
    %1710 = vmatpush1.msra.mxu0 %v404
    %1711 = vmatprep.subr.mxu0 0.0
    %1712 = vmatpush1.msra.mxu0 %v405
    %1713 = vmatprep.subr.mxu0 0.0
    %1714 = vmatpush1.msra.mxu0 0.0
    %1715 = vmatprep.subr.mxu0 0.0
    %1716 = vmatpush1.msra.mxu0 0.0
    %1717 = vmatprep.subr.mxu0 0.0
    %1718 = vmatpush1.msra.mxu0 0.0
    %1719 = vmatprep.subr.mxu0 0.0
    %1720 = vmatpush1.msra.mxu0 0.0
    %1721 = vmatprep.subr.mxu0 0.0
    %1722 = vmatpush1.msra.mxu0 0.0
    %1723 = vmatprep.subr.mxu0 0.0
    %1724 = vmatpush1.msra.mxu0 0.0
    %1725 = vmatprep.subr.mxu0 0.0
    %1726 = vmatpush1.msra.mxu0 0.0
    %1727 = vmatprep.subr.mxu0 0.0
    %1728 = vmatpush1.msra.mxu0 0.0
    %1729 = vmatprep.subr.mxu0 0.0
    %1730 = vmatpush1.msra.mxu0 0.0
    %1731 = vmatprep.subr.mxu0 0.0
    %1732 = vmatpush1.msra.mxu0 0.0
    %1733 = vmatprep.subr.mxu0 0.0
    %1734 = vmatpush1.msra.mxu0 0.0
    %1735 = vmatprep.subr.mxu0 0.0
    %1736 = vmatpush1.msra.mxu0 0.0
    %1737 = vmatprep.subr.mxu0 0.0
    %1738 = vmatpush1.msra.mxu0 0.0
    %1739 = vmatprep.subr.mxu0 0.0
    %1740 = vmatpush1.msra.mxu0 0.0
    %1741 = vmatprep.subr.mxu0 0.0
    %1742 = vmatpush1.msra.mxu0 0.0
    %1743 = vmatprep.subr.mxu0 0.0
    %1744 = vmatpush1.msra.mxu0 0.0
    %1745 = vmatprep.mubr.f32.mxu0 0.0
    %1746 = vmatmul.mubr.f32.gmra.mrb[0].mxu0 %v1589
    %v1747 = vpop.f32.mrb[0].mxu0
    %v1748 = vadd.f32 %v411, %v1747
    %v1749 = vpop.f32.mrb[0].mxu0
    %1750 = vdwg.mxu0
    %v1751 = vmul.f32 %v1673, %v1748
    %v1752 = vadd.f32 %v1595, %v1751
    %v1753 = vtanh.pop %v1752
    %v1754 = vsub.f32 1.0, %v1680
    %v1755 = vmul.f32 %v1754, %v1753
    %v1756 = vmul.f32 %v1680, %v1589
    %v1757 = vadd.f32 %v1755, %v1756
    %1758 = vst [vmem:[#allocation3] sm:$0xff] %v1757
    // Predicated region
    $region42: #{tpu_custom_call.1} parent=1 // pred_check
      %p1759 = pneg %p55
    $region43: #{tpu_custom_call.1} parent=1 // pred_check_branch
      %1761 = sbr.rel (%p1759) target = $region45
    $region44: #{tpu_custom_call.1} parent=1 // pred_region
      %v1762 = vld [vmem:[#allocation7] sm:$0xff]
      %v1763 = vld [vmem:[#allocation7 + $0x8] sm:$0xff]
      %v1764 = vld [vmem:[#allocation7 + $0x10] sm:$0xff]
      %v1765 = vld [vmem:[#allocation7 + $0x18] sm:$0xff]
      %v1766 = vld [vmem:[#allocation7 + $0x20] sm:$0xff]
      %v1767 = vld [vmem:[#allocation7 + $0x28] sm:$0xff]
      %v1768 = vld [vmem:[#allocation7 + $0x30] sm:$0xff]
      %v1769 = vld [vmem:[#allocation7 + $0x38] sm:$0xff]
      %v1770 = vld [vmem:[#allocation7 + $0x40] sm:$0xff]
      %v1771 = vld [vmem:[#allocation7 + $0x48] sm:$0xff]
      %v1772 = vld [vmem:[#allocation7 + $0x50] sm:$0xff]
      %v1773 = vld [vmem:[#allocation7 + $0x58] sm:$0xff]
      %v1774 = vld [vmem:[#allocation7 + $0x60] sm:$0xff]
      %v1775 = vld [vmem:[#allocation7 + $0x68] sm:$0xff]
      %v1776 = vld [vmem:[#allocation7 + $0x70] sm:$0xff]
      %v1777 = vld [vmem:[#allocation7 + $0x78] sm:$0xff]
      %v1778 = vld [vmem:[%s6] sm:$0x1]
      %v1780 = vlaneseq
      %v1781 = vshrl.u32 %v1780, 7
      %v1782 = vsub.s32 0, %v1781
      %v1783 = vrot.slane %v1778, %v1782
      %1785 = vmatprep.subr.mxu0 0.0
      %1786 = vmatpush1.msra.mxu0 %v1762
      %1787 = vmatprep.subr.mxu0 0.0
      %1788 = vmatpush1.msra.mxu0 %v1763
      %1789 = vmatprep.subr.mxu0 0.0
      %1790 = vmatpush1.msra.mxu0 %v1764
      %1791 = vmatprep.subr.mxu0 0.0
      %1792 = vmatpush1.msra.mxu0 %v1765
      %1793 = vmatprep.subr.mxu0 0.0
      %1794 = vmatpush1.msra.mxu0 %v1766
      %1795 = vmatprep.subr.mxu0 0.0
      %1796 = vmatpush1.msra.mxu0 %v1767
      %1797 = vmatprep.subr.mxu0 0.0
      %1798 = vmatpush1.msra.mxu0 %v1768
      %1799 = vmatprep.subr.mxu0 0.0
      %1800 = vmatpush1.msra.mxu0 %v1769
      %1801 = vmatprep.subr.mxu0 0.0
      %1802 = vmatpush1.msra.mxu0 %v1770
      %1803 = vmatprep.subr.mxu0 0.0
      %1804 = vmatpush1.msra.mxu0 %v1771
      %1805 = vmatprep.subr.mxu0 0.0
      %1806 = vmatpush1.msra.mxu0 %v1772
      %1807 = vmatprep.subr.mxu0 0.0
      %1808 = vmatpush1.msra.mxu0 %v1773
      %1809 = vmatprep.subr.mxu0 0.0
      %1810 = vmatpush1.msra.mxu0 %v1774
      %1811 = vmatprep.subr.mxu0 0.0
      %1812 = vmatpush1.msra.mxu0 %v1775
      %1813 = vmatprep.subr.mxu0 0.0
      %1814 = vmatpush1.msra.mxu0 %v1776
      %1815 = vmatprep.subr.mxu0 0.0
      %1816 = vmatpush1.msra.mxu0 %v1777
      %1817 = vmatprep.subr.mxu0 0.0
      %1818 = vmatpush1.msra.mxu0 0.0
      %1819 = vmatprep.subr.mxu0 0.0
      %1820 = vmatpush1.msra.mxu0 0.0
      %1821 = vmatprep.subr.mxu0 0.0
      %1822 = vmatpush1.msra.mxu0 0.0
      %1823 = vmatprep.subr.mxu0 0.0
      %1824 = vmatpush1.msra.mxu0 0.0
      %1825 = vmatprep.subr.mxu0 0.0
      %1826 = vmatpush1.msra.mxu0 0.0
      %1827 = vmatprep.subr.mxu0 0.0
      %1828 = vmatpush1.msra.mxu0 0.0
      %1829 = vmatprep.subr.mxu0 0.0
      %1830 = vmatpush1.msra.mxu0 0.0
      %1831 = vmatprep.subr.mxu0 0.0
      %1832 = vmatpush1.msra.mxu0 0.0
      %1833 = vmatprep.subr.mxu0 0.0
      %1834 = vmatpush1.msra.mxu0 0.0
      %1835 = vmatprep.subr.mxu0 0.0
      %1836 = vmatpush1.msra.mxu0 0.0
      %1837 = vmatprep.subr.mxu0 0.0
      %1838 = vmatpush1.msra.mxu0 0.0
      %1839 = vmatprep.subr.mxu0 0.0
      %1840 = vmatpush1.msra.mxu0 0.0
      %1841 = vmatprep.subr.mxu0 0.0
      %1842 = vmatpush1.msra.mxu0 0.0
      %1843 = vmatprep.subr.mxu0 0.0
      %1844 = vmatpush1.msra.mxu0 0.0
      %1845 = vmatprep.subr.mxu0 0.0
      %1846 = vmatpush1.msra.mxu0 0.0
      %1847 = vmatprep.subr.mxu0 0.0
      %1848 = vmatpush1.msra.mxu0 0.0
      %1849 = vmatprep.mubr.f32.mxu0 0.0
      %1850 = vmatmul.mubr.f32.gmra.mrb[0].mxu0 %v1757
      %v1851 = vpop.f32.mrb[0].mxu0
      %v1852 = vadd.f32 %v1783, %v1851
      %v1853 = vpop.f32.mrb[0].mxu0
      %1854 = vdwg.mxu0
      %1855 = vst [vmem:[#allocation9] sm:$0xff] %v1852
    $region45: #{tpu_custom_call.1} parent=1 // pred_fallthru
      _
    // Predicated region
    $region46: #{tpu_custom_call.1} parent=1 // pred_check
      _
    $region47: #{tpu_custom_call.1} parent=1 // pred_check_branch
      %1857 = sbr.rel (0) target = $region49
    $region48: #{tpu_custom_call.1} parent=1 // pred_region
      %s1859 = ssub.s32 128, 128
      %1860 = vsyncadd [#allocation6], %s1859
      %s1862 = sshll.u32 [#allocation9], 4
      %s1863 = int_to_ptr.vmem [resolvable:$true] %s1862
      %1865 = dma.vmem_to_hbm [thread:$0]  %s1863, 128, %s7, [#allocation6]
    $region49: #{tpu_custom_call.1} parent=1 // pred_fallthru
      _
    // Predicated region
    $region50: #{tpu_custom_call.1} parent=1 // pred_check
      _
    $region51: #{tpu_custom_call.1} parent=1 // pred_check_branch
      %1867 = sbr.rel (0) target = $region53
    $region52: #{tpu_custom_call.1} parent=1 // pred_region
      %1868 = dma.done [#allocation6], 128
    $region53: #{tpu_custom_call.1} parent=1 // pred_fallthru
      _
    %1869 = vsyncpa [#allocation5], 1
    %1870 = vsyncpa [#allocation8], 1
    %1871 = vsyncpa [#allocation6], 1

</llo_original>
